<compile_context>
chip_gen: v7x
topology: tpu7x:2x2x1
jax: 0.10.0
libtpu: 0.0.40
codegen_flags: <defaults>
</compile_context>

<pallas_src>
import jax
import jax.numpy as jnp
from jax.experimental import pallas as pl
from jax.experimental.pallas import tpu as pltpu


def _round_up(x: int, m: int) -> int:
    return (x + m - 1) // m * m


def _pad2d(a, target_shape):
    return jnp.pad(a, [(0, t - s) for s, t in zip(a.shape, target_shape)])


# ------------------------------ kernel --------------------------------------

def _gru_recurrent_kernel(q0_ref, w1_ref, b1_ref, uh_ref, out_ref, q_ref):
    """One GRU-cell step per grid iteration; Q carried in VMEM scratch.

      pre1   = [Wu+Uu ; Wr+Ur ; Wh] @ Q + [bu ; br ; bh]     # one MXU matmul
      z, r   = sigmoid(pre1[z-block]), sigmoid(pre1[r-block])
      h_cap  = tanh(pre1[h-block] + Uh @ (r * Q))            # second matmul
      Q_new  = (1 - z) * Q + z * h_cap
    """
    mp = uh_ref.shape[0]          # 176: sublane-padded row count (z / h blocks)
    kp = q_ref.shape[0]           # 256: lane-dense contraction dim (r block)

    @pl.when(pl.program_id(0) == 0)
    def _():
        q_ref[...] = q0_ref[...]                 # load initial state once

    q = q_ref[...]                               # (kp, cp) f32, zero-padded
    q_bf = q.astype(jnp.bfloat16)

    # Matmul #1 (weights VMEM-resident), stacked bias folded into the epilogue.
    pre1 = jnp.dot(w1_ref[...], q_bf,
                   preferred_element_type=jnp.float32) + b1_ref[...]
    z = jax.nn.sigmoid(pre1[:mp, :])             # (mp, cp)
    r = jax.nn.sigmoid(pre1[mp:mp + kp, :])      # (kp, cp); padded rows -> 0.5
    whq_b = pre1[mp + kp:, :]                    # (mp, cp) = Wh@Q + bh

    # Matmul #2: Uh @ (r*Q), K = kp, no concat/copy (padded rows of r*Q are 0).
    rq_bf = (r * q).astype(jnp.bfloat16)         # (kp, cp)
    h_cap = jnp.tanh(whq_b + jnp.dot(uh_ref[...], rq_bf,
                                     preferred_element_type=jnp.float32))

    new_q = (1.0 - z) * q[:mp, :] + z * h_cap    # (mp, cp); padded rows stay 0
    q_ref[:mp, :] = new_q                        # carry state to next step
    out_ref[...] = new_q.astype(out_ref.dtype)   # per-step lane-dense output


# --------------------------- one-time param prep -----------------------------

def fuse_and_pad_params(params, rows, cols):
    """Fuse, pad and bf16-cast the weights once (amortized over all steps)."""
    kp = _round_up(rows, 128)     # 162 -> 256: contraction / lane-dense dim
    mp = _round_up(rows, 16)      # 162 -> 176: sublane-only padding for M dims
    cp = _round_up(cols, 128)     # 100 -> 128: lane-dense output

    def wpad(w, m_rows):
        return _pad2d(w.astype(jnp.float32), (m_rows, kp))

    def bpad(b, m_rows):
        return _pad2d(b.astype(jnp.float32), (m_rows, cp))

    # Stacked matmul-#1 weight: [Wu+Uu (mp) ; Wr+Ur (kp) ; Wh (mp)].
    # The r-block is padded to kp rows so that r has the same row extent as
    # the carried Q slab -> r*Q feeds matmul #2 at K=kp without any copy.
    w1 = jnp.concatenate([wpad(params["Wu"] + params["Uu"], mp),
                          wpad(params["Wr"] + params["Ur"], kp),
                          wpad(params["Wh"], mp)],
                         axis=0).astype(jnp.bfloat16)            # (mp+kp+mp, kp)
    b1 = jnp.concatenate([bpad(params["bu"], mp),
                          bpad(params["br"], kp),
                          bpad(params["bh"], mp)], axis=0)       # (mp+kp+mp, cp)
    uh = wpad(params["Uh"], mp).astype(jnp.bfloat16)             # (mp, kp)
    return dict(w1=w1, b1=b1, uh=uh, mp=mp, kp=kp, cp=cp)


# ------------------------------ wrapper --------------------------------------

def mat_gru_cell_2_recurrent(q0, fused, rows, cols, num_steps):
    """Run num_steps GRU-cell updates Q_{t+1} = cell(Q_t) in one pallas_call.

    Returns the per-step trajectory, shape (num_steps, rows, cols).
    """
    mp, kp, cp = fused["mp"], fused["kp"], fused["cp"]
    q0_pad = _pad2d(q0.astype(jnp.float32), (kp, cp))   # pad once

    def const_spec(shape):
        return pl.BlockSpec(shape, lambda t: (0, 0))    # DMA once, VMEM-resident

    flops = 2 * num_steps * (fused["w1"].shape[0] + mp) * kp * cp
    transcendentals = num_steps * (2 * mp + kp) * cp
    bytes_accessed = (fused["w1"].size * 2 + fused["b1"].size * 4
                      + fused["uh"].size * 2 + q0_pad.size * 4
                      + num_steps * mp * cp * 4)

    out = pl.pallas_call(
        _gru_recurrent_kernel,
        out_shape=jax.ShapeDtypeStruct((num_steps, mp, cp), jnp.float32),
        grid_spec=pltpu.PrefetchScalarGridSpec(
            num_scalar_prefetch=0,
            grid=(num_steps,),
            in_specs=[const_spec((kp, cp)),              # q0 (used at t==0 only)
                      const_spec(fused["w1"].shape),     # stacked W, resident
                      const_spec(fused["b1"].shape),     # stacked bias, resident
                      const_spec(fused["uh"].shape)],    # Uh, resident
            out_specs=pl.BlockSpec((None, mp, cp), lambda t: (t, 0, 0)),
            scratch_shapes=[pltpu.VMEM((kp, cp), jnp.float32)],   # carried Q
        ),
        compiler_params=pltpu.CompilerParams(
            dimension_semantics=("arbitrary",),          # recurrent time axis
            vmem_limit_bytes=8 * 1024 * 1024),
        cost_estimate=pl.CostEstimate(flops=int(flops),
                                      transcendentals=int(transcendentals),
                                      bytes_accessed=int(bytes_accessed)),
    )(q0_pad, fused["w1"], fused["b1"], fused["uh"])
    return out[:, :rows, :cols]                          # slice once at the end


# ----------------------------- references ------------------------------------

def _reference_f32(q0, p, num_steps):
    """Pure f32 reference mirroring the PyTorch forward (3 separate gates)."""
    def gate(w, u, b, x, h, act):
        return act(w @ x + u @ h + b)
    q = q0.astype(jnp.float32)
    outs = []
    for _ in range(num_steps):
        z = gate(p["Wu"], p["Uu"], p["bu"], q, q, jax.nn.sigmoid)
        r = gate(p["Wr"], p["Ur"], p["br"], q, q, jax.nn.sigmoid)
        h_cap = gate(p["Wh"], p["Uh"], p["bh"], q, r * q, jnp.tanh)
        q = (1.0 - z) * q + z * h_cap
        outs.append(q)
    return jnp.stack(outs)


def _reference_bf16_matched(q0, p, num_steps):
    """Reference using the same fusion / bf16-operand numerics as the kernel."""
    w_zu = (p["Wu"] + p["Uu"]).astype(jnp.bfloat16)
    w_zr = (p["Wr"] + p["Ur"]).astype(jnp.bfloat16)
    w_h = p["Wh"].astype(jnp.bfloat16)
    u_h = p["Uh"].astype(jnp.bfloat16)
    q = q0.astype(jnp.float32)
    outs = []
    for _ in range(num_steps):
        q_bf = q.astype(jnp.bfloat16)
        z = jax.nn.sigmoid(jnp.dot(w_zu, q_bf, preferred_element_type=jnp.float32)
                           + p["bu"])
        r = jax.nn.sigmoid(jnp.dot(w_zr, q_bf, preferred_element_type=jnp.float32)
                           + p["br"])
        whq_b = jnp.dot(w_h, q_bf, preferred_element_type=jnp.float32) + p["bh"]
        rq_bf = (r * q).astype(jnp.bfloat16)
        h_cap = jnp.tanh(whq_b + jnp.dot(u_h, rq_bf,
                                         preferred_element_type=jnp.float32))
        q = (1.0 - z) * q + z * h_cap
        outs.append(q)
    return jnp.stack(outs)


# ------------------------------- main ----------------------------------------

if __name__ == "__main__":
    # The module's documented shapes: rows=162, cols=100; small recurrence.
    rows, cols, num_steps = 162, 100, 8
    key = jax.random.PRNGKey(0)
    ks = jax.random.split(key, 10)

    # PyTorch __init__ zero-inits the parameters; use small deterministic
    # random values instead so the computation is non-trivial.
    def rr(k):
        return jax.random.normal(k, (rows, rows), jnp.float32) * 0.1

    def rc(k):
        return jax.random.normal(k, (rows, cols), jnp.float32) * 0.1

    params = {
        "Wu": rr(ks[0]), "Uu": rr(ks[1]), "bu": rc(ks[2]),
        "Wr": rr(ks[3]), "Ur": rr(ks[4]), "br": rc(ks[5]),
        "Wh": rr(ks[6]), "Uh": rr(ks[7]), "bh": rc(ks[8]),
    }
    q0 = jax.random.normal(ks[9], (rows, cols), jnp.float32)

    fused = fuse_and_pad_params(params, rows, cols)      # one-time prep
    traj = mat_gru_cell_2_recurrent(q0, fused, rows, cols, num_steps)
    traj = jax.block_until_ready(traj)
    assert traj.shape == (num_steps, rows, cols)

    # Strict check of the full trajectory against a reference with matched
    # fusion / bf16-operand numerics.
    ref_matched = _reference_bf16_matched(q0, params, num_steps)
    assert jnp.allclose(traj, ref_matched, atol=2e-3, rtol=2e-3), \
        "mismatch vs bf16-matched reference"

    # Sanity check of the first step (one module-forward application) against
    # the pure-f32 PyTorch-equivalent formula (loose: bf16 MXU operands).
    ref_f32 = _reference_f32(q0, params, num_steps)
    assert jnp.allclose(traj[0], ref_f32[0], atol=1e-1, rtol=5e-2), \
        "mismatch vs f32 reference (first step)"

    print("KERNEL_OK")
</pallas_src>

<mosaic_0001>
module attributes {stable_mosaic.version = 11 : i64} {
  func.func @_gru_recurrent_kernel(%arg0: i32, %arg1: memref<256x128xf32, #tpu.memory_space<vmem>>, %arg2: memref<608x256xbf16, #tpu.memory_space<vmem>>, %arg3: memref<608x128xf32, #tpu.memory_space<vmem>>, %arg4: memref<176x256xbf16, #tpu.memory_space<vmem>>, %arg5: memref<1x176x128xf32, #tpu.memory_space<vmem>>, %arg6: memref<256x128xf32, #tpu.memory_space<vmem>>) attributes {dimension_semantics = [#tpu.dimension_semantics<arbitrary>], iteration_bounds = array<i64: 8>, scalar_prefetch = 0 : i64, scratch_operands = 1 : i64, tpu.core_type = #tpu.core_type<tc>, window_params = [{pipeline_mode = #tpu.pipeline_mode<synchronous>, transform_indices = @transform_0, window_bounds = array<i64: 256, 128>}, {pipeline_mode = #tpu.pipeline_mode<synchronous>, transform_indices = @transform_1, window_bounds = array<i64: 608, 256>}, {pipeline_mode = #tpu.pipeline_mode<synchronous>, transform_indices = @transform_2, window_bounds = array<i64: 608, 128>}, {pipeline_mode = #tpu.pipeline_mode<synchronous>, transform_indices = @transform_3, window_bounds = array<i64: 176, 256>}, {transform_indices = @transform_4, window_bounds = array<i64: 1, 176, 128>}]} {
    %c0_i32 = arith.constant 0 : i32
    %0 = arith.cmpi eq, %arg0, %c0_i32 : i32
    %1 = arith.extui %0 : i1 to i32
    %c0_i32_0 = arith.constant 0 : i32
    %2 = arith.cmpi ne, %1, %c0_i32_0 : i32
    scf.if %2 {
      %c0_17 = arith.constant 0 : index
      %c0_18 = arith.constant 0 : index
      %38 = vector.load %arg1[%c0_17, %c0_18] : memref<256x128xf32, #tpu.memory_space<vmem>>, vector<256x128xf32>
      %c0_19 = arith.constant 0 : index
      %c0_20 = arith.constant 0 : index
      %39 = vector.load %arg6[%c0_19, %c0_20] : memref<256x128xf32, #tpu.memory_space<vmem>>, vector<256x128xf32>
      tpu.vector_store %arg6[%c0_19, %c0_20], %38 {strides = array<i32>} : memref<256x128xf32, #tpu.memory_space<vmem>>, vector<256x128xf32>,
    } else {
    }
    %c0 = arith.constant 0 : index
    %c0_1 = arith.constant 0 : index
    %3 = vector.load %arg6[%c0, %c0_1] : memref<256x128xf32, #tpu.memory_space<vmem>>, vector<256x128xf32>
    %4 = arith.truncf %3 : vector<256x128xf32> to vector<256x128xbf16>
    %c0_2 = arith.constant 0 : index
    %c0_3 = arith.constant 0 : index
    %5 = vector.load %arg2[%c0_2, %c0_3] : memref<608x256xbf16, #tpu.memory_space<vmem>>, vector<608x256xbf16>
    %cst = arith.constant dense<0.000000e+00> : vector<608x128xf32>
    %6 = tpu.matmul %5, %4, %cst {dimension_numbers = #tpu.dot_dimension_numbers<[1], [0], [0], [1], [0, 0, 1, 1], [], []>} : vector<608x256xbf16>, vector<256x128xbf16>, vector<608x128xf32> -> vector<608x128xf32>
    %c0_4 = arith.constant 0 : index
    %c0_5 = arith.constant 0 : index
    %7 = vector.load %arg3[%c0_4, %c0_5] : memref<608x128xf32, #tpu.memory_space<vmem>>, vector<608x128xf32>
    %8 = arith.addf %6, %7 : vector<608x128xf32>
    %9 = vector.extract_strided_slice %8 {offsets = [0, 0], sizes = [176, 128], strides = [1, 1]} : vector<608x128xf32> to vector<176x128xf32>
    %10 = arith.negf %9 : vector<176x128xf32>
    %11 = math.exp %10 : vector<176x128xf32>
    %cst_6 = arith.constant 1.000000e+00 : f32
    %12 = vector.broadcast %cst_6 : f32 to vector<176x128xf32>
    %13 = arith.addf %12, %11 : vector<176x128xf32>
    %14 = arith.divf %12, %13 : vector<176x128xf32>
    %15 = vector.extract_strided_slice %8 {offsets = [176, 0], sizes = [256, 128], strides = [1, 1]} : vector<608x128xf32> to vector<256x128xf32>
    %16 = arith.negf %15 : vector<256x128xf32>
    %17 = math.exp %16 : vector<256x128xf32>
    %cst_7 = arith.constant 1.000000e+00 : f32
    %18 = vector.broadcast %cst_7 : f32 to vector<256x128xf32>
    %19 = arith.addf %18, %17 : vector<256x128xf32>
    %20 = arith.divf %18, %19 : vector<256x128xf32>
    %21 = vector.extract_strided_slice %8 {offsets = [432, 0], sizes = [176, 128], strides = [1, 1]} : vector<608x128xf32> to vector<176x128xf32>
    %22 = arith.mulf %20, %3 : vector<256x128xf32>
    %23 = arith.truncf %22 : vector<256x128xf32> to vector<256x128xbf16>
    %c0_8 = arith.constant 0 : index
    %c0_9 = arith.constant 0 : index
    %24 = vector.load %arg4[%c0_8, %c0_9] : memref<176x256xbf16, #tpu.memory_space<vmem>>, vector<176x256xbf16>
    %cst_10 = arith.constant dense<0.000000e+00> : vector<176x128xf32>
    %25 = tpu.matmul %24, %23, %cst_10 {dimension_numbers = #tpu.dot_dimension_numbers<[1], [0], [0], [1], [0, 0, 1, 1], [], []>} : vector<176x256xbf16>, vector<256x128xbf16>, vector<176x128xf32> -> vector<176x128xf32>
    %26 = arith.addf %21, %25 : vector<176x128xf32>
    %27 = math.tanh %26 : vector<176x128xf32>
    %cst_11 = arith.constant 1.000000e+00 : f32
    %28 = vector.broadcast %cst_11 : f32 to vector<176x128xf32>
    %29 = arith.subf %28, %14 : vector<176x128xf32>
    %30 = vector.extract_strided_slice %3 {offsets = [0, 0], sizes = [176, 128], strides = [1, 1]} : vector<256x128xf32> to vector<176x128xf32>
    %31 = arith.mulf %29, %30 : vector<176x128xf32>
    %32 = arith.mulf %14, %27 : vector<176x128xf32>
    %33 = arith.addf %31, %32 : vector<176x128xf32>
    %c0_12 = arith.constant 0 : index
    %c0_13 = arith.constant 0 : index
    %34 = vector.load %arg6[%c0_12, %c0_13] : memref<256x128xf32, #tpu.memory_space<vmem>>, vector<176x128xf32>
    tpu.vector_store %arg6[%c0_12, %c0_13], %33 {strides = array<i32>} : memref<256x128xf32, #tpu.memory_space<vmem>>, vector<176x128xf32>,
    %c0_14 = arith.constant 0 : index
    %c0_15 = arith.constant 0 : index
    %c0_16 = arith.constant 0 : index
    %35 = vector.load %arg5[%c0_14, %c0_15, %c0_16] : memref<1x176x128xf32, #tpu.memory_space<vmem>>, vector<1x176x128xf32>
    %36 = vector.shape_cast %35 : vector<1x176x128xf32> to vector<176x128xf32>
    %37 = vector.shape_cast %33 : vector<176x128xf32> to vector<1x176x128xf32>
    tpu.vector_store %arg5[%c0_14, %c0_15, %c0_16], %37 {strides = array<i32>} : memref<1x176x128xf32, #tpu.memory_space<vmem>>, vector<1x176x128xf32>,
    return
  }
  func.func @transform_0(%arg0: i32) -> (i32, i32) {
    %c0_i32 = arith.constant 0 : i32
    %c0_i32_0 = arith.constant 0 : i32
    %c0_i32_1 = arith.constant 0 : i32
    return %c0_i32, %c0_i32_0 : i32, i32
  }
  func.func @transform_1(%arg0: i32) -> (i32, i32) {
    %c0_i32 = arith.constant 0 : i32
    %c0_i32_0 = arith.constant 0 : i32
    %c0_i32_1 = arith.constant 0 : i32
    return %c0_i32, %c0_i32_0 : i32, i32
  }
  func.func @transform_2(%arg0: i32) -> (i32, i32) {
    %c0_i32 = arith.constant 0 : i32
    %c0_i32_0 = arith.constant 0 : i32
    %c0_i32_1 = arith.constant 0 : i32
    return %c0_i32, %c0_i32_0 : i32, i32
  }
  func.func @transform_3(%arg0: i32) -> (i32, i32) {
    %c0_i32 = arith.constant 0 : i32
    %c0_i32_0 = arith.constant 0 : i32
    %c0_i32_1 = arith.constant 0 : i32
    return %c0_i32, %c0_i32_0 : i32, i32
  }
  func.func @transform_4(%arg0: i32) -> (i32, i32, i32) {
    %c0_i32 = arith.constant 0 : i32
    %c0_i32_0 = arith.constant 0 : i32
    %c0_i32_1 = arith.constant 0 : i32
    return %arg0, %c0_i32, %c0_i32_0 : i32, i32, i32
  }
}

</mosaic_0001>

<llo_original>
// kernel: tpu_custom_call.1
$region0: #{tpu_custom_call.1}
  #allocation0 [shape = 'u32[]', space=smem, size = 0x4, offset = 0x4, fixed_abs, tag = 'smem constant byte address 0x4 - core index']
  #allocation1 [shape = 'u32[144,128]{1,0:T(1,128)}', space=vmem, size = 0x12000, scoped, tag = 'internal scratch']
  #allocation2 [shape = 'f32[256,128]{1,0:T(8,128)}', space=vmem, size = 0x20000, scoped, tag = 'scratch operand']
  %s0 = inlined_call_operand.hbm [shape: f32[256,128], index: 0, kind: input, shape index: {}]
  %s1 = inlined_call_operand.hbm [shape: bf16[608,256], index: 1, kind: input, shape index: {}]
  %s2 = inlined_call_operand.hbm [shape: f32[608,128], index: 2, kind: input, shape index: {}]
  %s3 = inlined_call_operand.hbm [shape: bf16[176,256], index: 3, kind: input, shape index: {}]
  %s4 = inlined_call_operand.hbm [shape: f32[8,176,128], index: 4, kind: output, shape index: {}]
  %s5 = sld [smem:[#allocation0]]
  $region69: #{tpu_custom_call.1} parent=0
    _
  %s7 = ssub.s32 1, %s5
  %s8 = scalar_select 0, %s7, %s5
  $region1: #{tpu_custom_call.1} parent=0
    #allocation3 [shape = 'u8[131072]{0}', space=vmem, size = 0x20000, scoped, tag = 'input window, operand 0, single buffered']
    #allocation4 [shape = 's32[2]{0}', space=sflag, size = 0x8, scoped, tag = 'scoped memory for tpu_custom_call.1']
    #allocation5 [shape = 's32[2]{0}', space=sflag, size = 0x8, scoped, tag = 'scoped memory for tpu_custom_call.1']
    #allocation6 [shape = 'u8[311296]{0}', space=vmem, size = 0x4c000, scoped, tag = 'input window, operand 1, single buffered']
    #allocation7 [shape = 's32[1]{0}', space=sflag, size = 0x4, scoped, tag = 'scoped memory for tpu_custom_call.1']
    #allocation8 [shape = 'u8[311296]{0}', space=vmem, size = 0x4c000, scoped, tag = 'input window, operand 2, single buffered']
    #allocation9 [shape = 'u8[90112]{0}', space=vmem, size = 0x16000, scoped, tag = 'input window, operand 3, single buffered']
    #allocation10 [shape = 's32[1]{0}', space=sflag, size = 0x4, scoped, tag = 'scoped memory for tpu_custom_call.1']
    #allocation11 [shape = 'u8[180224]{0}', space=vmem, size = 0x2c000, scoped, tag = 'output window, operand 0']
    %9 = vsyncpa [#allocation4], 0
    %10 = vsyncpa [#allocation7], 0
    %11 = vsyncpa [#allocation10], 0
    %12 = vsyncpa [#allocation5], 0
    %s13 = scalar_lea.sflag [#allocation5], 1
    %14 = vsyncpa %s13, 0
    loop: start=0, step=1, limit=10
    $region2: #{tpu_custom_call.1} parent=1 // loop_pre_header
      _
    $region3: #{tpu_custom_call.1} parent=1 // loop_header
      %s16 = sphi 0, %s20
      %p17 = scmp.ge.s32.totalorder %s16, 10
      %s24 = sphi 0, %s24
      %s26 = sphi 0, %s24
      %s27 = sphi 0, %s26
      %s41 = sphi 0, %s27
      %s45 = sphi 0, %s45
      %s47 = sphi 0, %s45
      %s48 = sphi 0, %s47
      %s62 = sphi 0, %s48
      %s66 = sphi 0, %s66
      %s68 = sphi 0, %s66
      %s69 = sphi 0, %s68
      %s83 = sphi 0, %s69
      %s87 = sphi 0, %s87
      %s89 = sphi 0, %s87
      %s90 = sphi 0, %s89
      %s104 = sphi 0, %s90
      %s110 = sphi 0, %s112
      %s113 = sphi 0, %s110
      %s114 = sphi 0, %s113
      %s130 = sphi 0, %s114
    $region4: #{tpu_custom_call.1} parent=1 // loop_header_branch
      %19 = sbr.rel (%p17) target = $region8
    $region5: #{tpu_custom_call.1} parent=1 // loop_body
      %s21 = ssub.s32 %s16, 1
      %s22 = ssub.s32 %s16, 2
      %s23 = sadd.s32 %s16, 1
      %s25 = sadd.s32 %s24, 1
      %p28 = scmp.eq.s32.totalorder %s16, 7
      %p29 = scmp.ne.s32.totalorder %s24, %s26
      %p30 = scmp.eq.s32.totalorder %s16, 0
      %p31 = por %p29, %p30
      %p32 = scmp.ne.s32.totalorder %s24, %s26
      %p33 = scmp.eq.s32.totalorder %s21, 7
      %p34 = por %p32, %p33
      %p35 = scmp.ne.s32.totalorder %s26, %s27
      %p36 = scmp.eq.s32.totalorder %s21, 0
      %p37 = por %p35, %p36
      %p38 = scmp.ne.s32.totalorder %s26, %s27
      %p39 = scmp.eq.s32.totalorder %s22, 7
      %p40 = por %p38, %p39
      %p42 = scmp.ne.s32.totalorder %s27, %s41
      %p43 = scmp.eq.s32.totalorder %s22, 0
      %p44 = por %p42, %p43
      %s46 = sadd.s32 %s45, 1
      %p49 = scmp.eq.s32.totalorder %s16, 7
      %p50 = scmp.ne.s32.totalorder %s45, %s47
      %p51 = scmp.eq.s32.totalorder %s16, 0
      %p52 = por %p50, %p51
      %p53 = scmp.ne.s32.totalorder %s45, %s47
      %p54 = scmp.eq.s32.totalorder %s21, 7
      %p55 = por %p53, %p54
      %p56 = scmp.ne.s32.totalorder %s47, %s48
      %p57 = scmp.eq.s32.totalorder %s21, 0
      %p58 = por %p56, %p57
      %p59 = scmp.ne.s32.totalorder %s47, %s48
      %p60 = scmp.eq.s32.totalorder %s22, 7
      %p61 = por %p59, %p60
      %p63 = scmp.ne.s32.totalorder %s48, %s62
      %p64 = scmp.eq.s32.totalorder %s22, 0
      %p65 = por %p63, %p64
      %s67 = sadd.s32 %s66, 1
      %p70 = scmp.eq.s32.totalorder %s16, 7
      %p71 = scmp.ne.s32.totalorder %s66, %s68
      %p72 = scmp.eq.s32.totalorder %s16, 0
      %p73 = por %p71, %p72
      %p74 = scmp.ne.s32.totalorder %s66, %s68
      %p75 = scmp.eq.s32.totalorder %s21, 7
      %p76 = por %p74, %p75
      %p77 = scmp.ne.s32.totalorder %s68, %s69
      %p78 = scmp.eq.s32.totalorder %s21, 0
      %p79 = por %p77, %p78
      %p80 = scmp.ne.s32.totalorder %s68, %s69
      %p81 = scmp.eq.s32.totalorder %s22, 7
      %p82 = por %p80, %p81
      %p84 = scmp.ne.s32.totalorder %s69, %s83
      %p85 = scmp.eq.s32.totalorder %s22, 0
      %p86 = por %p84, %p85
      %s88 = sadd.s32 %s87, 1
      %p91 = scmp.eq.s32.totalorder %s16, 7
      %p92 = scmp.ne.s32.totalorder %s87, %s89
      %p93 = scmp.eq.s32.totalorder %s16, 0
      %p94 = por %p92, %p93
      %p95 = scmp.ne.s32.totalorder %s87, %s89
      %p96 = scmp.eq.s32.totalorder %s21, 7
      %p97 = por %p95, %p96
      %p98 = scmp.ne.s32.totalorder %s89, %s90
      %p99 = scmp.eq.s32.totalorder %s21, 0
      %p100 = por %p98, %p99
      %p101 = scmp.ne.s32.totalorder %s89, %s90
      %p102 = scmp.eq.s32.totalorder %s22, 7
      %p103 = por %p101, %p102
      %p105 = scmp.ne.s32.totalorder %s90, %s104
      %p106 = scmp.eq.s32.totalorder %s22, 0
      %p107 = por %p105, %p106
      %s108 = ssub.s32 %s16, %s23
      %p109 = scmp.eq.s32.totalorder %s108, 0
      %s111 = sadd.s32 %s110, 1
      %s112 = scalar_select %p109, %s110, %s111
      %p115 = pneg %p109
      %p116 = scmp.eq.s32.totalorder %s16, 7
      %p117 = por %p115, %p116
      %p118 = scmp.ne.s32.totalorder %s110, %s113
      %p119 = scmp.eq.s32.totalorder %s16, 0
      %p120 = por %p118, %p119
      %p121 = scmp.ne.s32.totalorder %s110, %s113
      %p122 = scmp.eq.s32.totalorder %s21, 7
      %p123 = por %p121, %p122
      %p124 = scmp.ne.s32.totalorder %s113, %s114
      %p125 = scmp.eq.s32.totalorder %s21, 0
      %p126 = por %p124, %p125
      %p127 = scmp.ne.s32.totalorder %s113, %s114
      %p128 = scmp.eq.s32.totalorder %s22, 7
      %p129 = por %p127, %p128
      %p131 = scmp.ne.s32.totalorder %s114, %s130
      %p132 = scmp.eq.s32.totalorder %s22, 0
      %p133 = por %p131, %p132
      %p134 = scmp.le.s32.totalorder 1, %s16
      %p135 = scmp.lt.s32.totalorder %s16, 9
      %p136 = pnand %p134, %p135
      %p137 = pneg %p136
      // Predicated region
      $region9: #{tpu_custom_call.1} parent=5 // pred_check
        _
      $region10: #{tpu_custom_call.1} parent=5 // pred_check_branch
        %139 = sbr.rel (%p136) target = $region12
      $region11: #{tpu_custom_call.1} parent=5 // pred_region
        %s140 = ssub.s32 %s16, 1
        // Predicated region
        $region13: #{tpu_custom_call.1} parent=11 // pred_check
          %p141 = pneg %p37
        $region14: #{tpu_custom_call.1} parent=11 // pred_check_branch
          %143 = sbr.rel (%p141) target = $region16
        $region15: #{tpu_custom_call.1} parent=11 // pred_region
          %s145 = ssub.s32 4096, 4096
          %146 = vsyncadd [#allocation4], %s145
          %s147 = sshll.u32 [#allocation3], 4
          %s148 = int_to_ptr.vmem [resolvable:$true] %s147
          %153 = dma.hbm_to_vmem [thread:$0]  %s0, 4096, %s148, [#allocation4], 128, 128, 8
        $region16: #{tpu_custom_call.1} parent=11 // pred_fallthru
          _
        // Predicated region
        $region17: #{tpu_custom_call.1} parent=11 // pred_check
          %p154 = pneg %p58
        $region18: #{tpu_custom_call.1} parent=11 // pred_check_branch
          %156 = sbr.rel (%p154) target = $region20
        $region19: #{tpu_custom_call.1} parent=11 // pred_region
          %s158 = ssub.s32 9728, 9728
          %159 = vsyncadd [#allocation7], %s158
          %s160 = sshll.u32 [#allocation6], 4
          %s161 = int_to_ptr.vmem [resolvable:$true] %s160
          %166 = dma.hbm_to_vmem [thread:$0]  %s1, 9728, %s161, [#allocation7], 128, 128, 8
        $region20: #{tpu_custom_call.1} parent=11 // pred_fallthru
          _
        // Predicated region
        $region21: #{tpu_custom_call.1} parent=11 // pred_check
          %p167 = pneg %p79
        $region22: #{tpu_custom_call.1} parent=11 // pred_check_branch
          %169 = sbr.rel (%p167) target = $region24
        $region23: #{tpu_custom_call.1} parent=11 // pred_region
          %s171 = ssub.s32 9728, 9728
          %172 = vsyncadd [#allocation7], %s171
          %s173 = sshll.u32 [#allocation8], 4
          %s174 = int_to_ptr.vmem [resolvable:$true] %s173
          %179 = dma.hbm_to_vmem [thread:$0]  %s2, 9728, %s174, [#allocation7], 128, 128, 8
        $region24: #{tpu_custom_call.1} parent=11 // pred_fallthru
          _
        // Predicated region
        $region25: #{tpu_custom_call.1} parent=11 // pred_check
          %p180 = pneg %p100
        $region26: #{tpu_custom_call.1} parent=11 // pred_check_branch
          %182 = sbr.rel (%p180) target = $region28
        $region27: #{tpu_custom_call.1} parent=11 // pred_region
          %s184 = ssub.s32 2816, 2816
          %185 = vsyncadd [#allocation10], %s184
          %s186 = sshll.u32 [#allocation9], 4
          %s187 = int_to_ptr.vmem [resolvable:$true] %s186
          %192 = dma.hbm_to_vmem [thread:$0]  %s3, 2816, %s187, [#allocation10], 128, 128, 8
        $region28: #{tpu_custom_call.1} parent=11 // pred_fallthru
          _
      $region12: #{tpu_custom_call.1} parent=5 // pred_fallthru
        _
      %p193 = scmp.lt.s32.totalorder %s16, 8
      // Predicated region
      $region29: #{tpu_custom_call.1} parent=5 // pred_check
        %p194 = pneg %p193
      $region30: #{tpu_custom_call.1} parent=5 // pred_check_branch
        %196 = sbr.rel (%p194) target = $region32
      $region31: #{tpu_custom_call.1} parent=5 // pred_region
        _
      $region32: #{tpu_custom_call.1} parent=5 // pred_fallthru
        _
      %p197 = scmp.le.s32.totalorder 1, %s16
      %p198 = scmp.lt.s32.totalorder %s16, 9
      %p199 = pnand %p197, %p198
      %p200 = pneg %p199
      // Predicated region
      $region33: #{tpu_custom_call.1} parent=5 // pred_check
        _
      $region34: #{tpu_custom_call.1} parent=5 // pred_check_branch
        %202 = sbr.rel (%p199) target = $region36
      $region35: #{tpu_custom_call.1} parent=5 // pred_region
        %s203 = ssub.s32 %s16, 1
        // Predicated region
        $region37: #{tpu_custom_call.1} parent=35 // pred_check
          %p204 = pneg %p37
        $region38: #{tpu_custom_call.1} parent=35 // pred_check_branch
          %206 = sbr.rel (%p204) target = $region40
        $region39: #{tpu_custom_call.1} parent=35 // pred_region
          %207 = dma.done [#allocation4], 4096
        $region40: #{tpu_custom_call.1} parent=35 // pred_fallthru
          _
        // Predicated region
        $region41: #{tpu_custom_call.1} parent=35 // pred_check
          %p208 = pneg %p58
        $region42: #{tpu_custom_call.1} parent=35 // pred_check_branch
          %210 = sbr.rel (%p208) target = $region44
        $region43: #{tpu_custom_call.1} parent=35 // pred_region
          %211 = dma.done [#allocation7], 9728
        $region44: #{tpu_custom_call.1} parent=35 // pred_fallthru
          _
        // Predicated region
        $region45: #{tpu_custom_call.1} parent=35 // pred_check
          %p212 = pneg %p79
        $region46: #{tpu_custom_call.1} parent=35 // pred_check_branch
          %214 = sbr.rel (%p212) target = $region48
        $region47: #{tpu_custom_call.1} parent=35 // pred_region
          %215 = dma.done [#allocation7], 9728
        $region48: #{tpu_custom_call.1} parent=35 // pred_fallthru
          _
        // Predicated region
        $region49: #{tpu_custom_call.1} parent=35 // pred_check
          %p216 = pneg %p100
        $region50: #{tpu_custom_call.1} parent=35 // pred_check_branch
          %218 = sbr.rel (%p216) target = $region52
        $region51: #{tpu_custom_call.1} parent=35 // pred_region
          %219 = dma.done [#allocation10], 2816
        $region52: #{tpu_custom_call.1} parent=35 // pred_fallthru
          _
        %p220 = pneg %p37
        %p221 = pneg %p34
        %p222 = pneg %p58
        %p223 = pneg %p55
        %p224 = pneg %p79
        %p225 = pneg %p76
        %p226 = pneg %p100
        %p227 = pneg %p97
        %p228 = pneg %p126
        %p229 = pneg %p123
        %s230 = sand.u32 %s113, 1
        %s231 = scalar_lea.sflag [#allocation5], %s230
        %s232 = sand.u32 %s113, 1
        %s233 = smul.addr %s232, 176
        %s234 = scalar_lea.vmem [#allocation11], %s233
        %p236 = scmp.eq.s32.totalorder %s21, 0
        // Predicated region
        $region53: #{tpu_custom_call.1} parent=35 // pred_check
          %p237 = pneg %p236
        $region54: #{tpu_custom_call.1} parent=35 // pred_check_branch
          %239 = sbr.rel (%p237) target = $region56
        $region55: #{tpu_custom_call.1} parent=35 // pred_region
          %v240 = vld [vmem:[#allocation3] sm:$0xff]
          %v241 = vld [vmem:[#allocation3 + $0x8] sm:$0xff]
          %v242 = vld [vmem:[#allocation3 + $0x10] sm:$0xff]
          %v243 = vld [vmem:[#allocation3 + $0x18] sm:$0xff]
          %v244 = vld [vmem:[#allocation3 + $0x20] sm:$0xff]
          %v245 = vld [vmem:[#allocation3 + $0x28] sm:$0xff]
          %v246 = vld [vmem:[#allocation3 + $0x30] sm:$0xff]
          %v247 = vld [vmem:[#allocation3 + $0x38] sm:$0xff]
          %v248 = vld [vmem:[#allocation3 + $0x40] sm:$0xff]
          %v249 = vld [vmem:[#allocation3 + $0x48] sm:$0xff]
          %v250 = vld [vmem:[#allocation3 + $0x50] sm:$0xff]
          %v251 = vld [vmem:[#allocation3 + $0x58] sm:$0xff]
          %v252 = vld [vmem:[#allocation3 + $0x60] sm:$0xff]
          %v253 = vld [vmem:[#allocation3 + $0x68] sm:$0xff]
          %v254 = vld [vmem:[#allocation3 + $0x70] sm:$0xff]
          %v255 = vld [vmem:[#allocation3 + $0x78] sm:$0xff]
          %v256 = vld [vmem:[#allocation3 + $0x80] sm:$0xff]
          %v257 = vld [vmem:[#allocation3 + $0x88] sm:$0xff]
          %v258 = vld [vmem:[#allocation3 + $0x90] sm:$0xff]
          %v259 = vld [vmem:[#allocation3 + $0x98] sm:$0xff]
          %v260 = vld [vmem:[#allocation3 + $0xa0] sm:$0xff]
          %v261 = vld [vmem:[#allocation3 + $0xa8] sm:$0xff]
          %v262 = vld [vmem:[#allocation3 + $0xb0] sm:$0xff]
          %v263 = vld [vmem:[#allocation3 + $0xb8] sm:$0xff]
          %v264 = vld [vmem:[#allocation3 + $0xc0] sm:$0xff]
          %v265 = vld [vmem:[#allocation3 + $0xc8] sm:$0xff]
          %v266 = vld [vmem:[#allocation3 + $0xd0] sm:$0xff]
          %v267 = vld [vmem:[#allocation3 + $0xd8] sm:$0xff]
          %v268 = vld [vmem:[#allocation3 + $0xe0] sm:$0xff]
          %v269 = vld [vmem:[#allocation3 + $0xe8] sm:$0xff]
          %v270 = vld [vmem:[#allocation3 + $0xf0] sm:$0xff]
          %v271 = vld [vmem:[#allocation3 + $0xf8] sm:$0xff]
          %272 = vst [vmem:[#allocation2] sm:$0xff] %v240
          %273 = vst [vmem:[#allocation2 + $0x8] sm:$0xff] %v241
          %274 = vst [vmem:[#allocation2 + $0x10] sm:$0xff] %v242
          %275 = vst [vmem:[#allocation2 + $0x18] sm:$0xff] %v243
          %276 = vst [vmem:[#allocation2 + $0x20] sm:$0xff] %v244
          %277 = vst [vmem:[#allocation2 + $0x28] sm:$0xff] %v245
          %278 = vst [vmem:[#allocation2 + $0x30] sm:$0xff] %v246
          %279 = vst [vmem:[#allocation2 + $0x38] sm:$0xff] %v247
          %280 = vst [vmem:[#allocation2 + $0x40] sm:$0xff] %v248
          %281 = vst [vmem:[#allocation2 + $0x48] sm:$0xff] %v249
          %282 = vst [vmem:[#allocation2 + $0x50] sm:$0xff] %v250
          %283 = vst [vmem:[#allocation2 + $0x58] sm:$0xff] %v251
          %284 = vst [vmem:[#allocation2 + $0x60] sm:$0xff] %v252
          %285 = vst [vmem:[#allocation2 + $0x68] sm:$0xff] %v253
          %286 = vst [vmem:[#allocation2 + $0x70] sm:$0xff] %v254
          %287 = vst [vmem:[#allocation2 + $0x78] sm:$0xff] %v255
          %288 = vst [vmem:[#allocation2 + $0x80] sm:$0xff] %v256
          %289 = vst [vmem:[#allocation2 + $0x88] sm:$0xff] %v257
          %290 = vst [vmem:[#allocation2 + $0x90] sm:$0xff] %v258
          %291 = vst [vmem:[#allocation2 + $0x98] sm:$0xff] %v259
          %292 = vst [vmem:[#allocation2 + $0xa0] sm:$0xff] %v260
          %293 = vst [vmem:[#allocation2 + $0xa8] sm:$0xff] %v261
          %294 = vst [vmem:[#allocation2 + $0xb0] sm:$0xff] %v262
          %295 = vst [vmem:[#allocation2 + $0xb8] sm:$0xff] %v263
          %296 = vst [vmem:[#allocation2 + $0xc0] sm:$0xff] %v264
          %297 = vst [vmem:[#allocation2 + $0xc8] sm:$0xff] %v265
          %298 = vst [vmem:[#allocation2 + $0xd0] sm:$0xff] %v266
          %299 = vst [vmem:[#allocation2 + $0xd8] sm:$0xff] %v267
          %300 = vst [vmem:[#allocation2 + $0xe0] sm:$0xff] %v268
          %301 = vst [vmem:[#allocation2 + $0xe8] sm:$0xff] %v269
          %302 = vst [vmem:[#allocation2 + $0xf0] sm:$0xff] %v270
          %303 = vst [vmem:[#allocation2 + $0xf8] sm:$0xff] %v271
        $region56: #{tpu_custom_call.1} parent=35 // pred_fallthru
          _
        %v304 = vld [vmem:[#allocation2] sm:$0xff]
        %v305 = vld [vmem:[#allocation2 + $0x8] sm:$0xff]
        %v306 = vld [vmem:[#allocation2 + $0x10] sm:$0xff]
        %v307 = vld [vmem:[#allocation2 + $0x18] sm:$0xff]
        %v308 = vld [vmem:[#allocation2 + $0x20] sm:$0xff]
        %v309 = vld [vmem:[#allocation2 + $0x28] sm:$0xff]
        %v310 = vld [vmem:[#allocation2 + $0x30] sm:$0xff]
        %v311 = vld [vmem:[#allocation2 + $0x38] sm:$0xff]
        %v312 = vld [vmem:[#allocation2 + $0x40] sm:$0xff]
        %v313 = vld [vmem:[#allocation2 + $0x48] sm:$0xff]
        %v314 = vld [vmem:[#allocation2 + $0x50] sm:$0xff]
        %v315 = vld [vmem:[#allocation2 + $0x58] sm:$0xff]
        %v316 = vld [vmem:[#allocation2 + $0x60] sm:$0xff]
        %v317 = vld [vmem:[#allocation2 + $0x68] sm:$0xff]
        %v318 = vld [vmem:[#allocation2 + $0x70] sm:$0xff]
        %v319 = vld [vmem:[#allocation2 + $0x78] sm:$0xff]
        %v320 = vld [vmem:[#allocation2 + $0x80] sm:$0xff]
        %v321 = vld [vmem:[#allocation2 + $0x88] sm:$0xff]
        %v322 = vld [vmem:[#allocation2 + $0x90] sm:$0xff]
        %v323 = vld [vmem:[#allocation2 + $0x98] sm:$0xff]
        %v324 = vld [vmem:[#allocation2 + $0xa0] sm:$0xff]
        %v325 = vld [vmem:[#allocation2 + $0xa8] sm:$0xff]
        %v326 = vld [vmem:[#allocation2 + $0xb0] sm:$0xff]
        %v327 = vld [vmem:[#allocation2 + $0xb8] sm:$0xff]
        %v328 = vld [vmem:[#allocation2 + $0xc0] sm:$0xff]
        %v329 = vld [vmem:[#allocation2 + $0xc8] sm:$0xff]
        %v330 = vld [vmem:[#allocation2 + $0xd0] sm:$0xff]
        %v331 = vld [vmem:[#allocation2 + $0xd8] sm:$0xff]
        %v332 = vld [vmem:[#allocation2 + $0xe0] sm:$0xff]
        %v333 = vld [vmem:[#allocation2 + $0xe8] sm:$0xff]
        %v334 = vld [vmem:[#allocation2 + $0xf0] sm:$0xff]
        %v335 = vld [vmem:[#allocation2 + $0xf8] sm:$0xff]
        %v336 = vpack.c.bf16 %v305, %v304
        %v337 = vpack.c.bf16 %v307, %v306
        %v338 = vpack.c.bf16 %v309, %v308
        %v339 = vpack.c.bf16 %v311, %v310
        %v340 = vpack.c.bf16 %v313, %v312
        %v341 = vpack.c.bf16 %v315, %v314
        %v342 = vpack.c.bf16 %v317, %v316
        %v343 = vpack.c.bf16 %v319, %v318
        %v344 = vpack.c.bf16 %v321, %v320
        %v345 = vpack.c.bf16 %v323, %v322
        %v346 = vpack.c.bf16 %v325, %v324
        %v347 = vpack.c.bf16 %v327, %v326
        %v348 = vpack.c.bf16 %v329, %v328
        %v349 = vpack.c.bf16 %v331, %v330
        %v350 = vpack.c.bf16 %v333, %v332
        %v351 = vpack.c.bf16 %v335, %v334
        %v352 = vld [vmem:[#allocation6] sm:$0xff]
        %v353 = vld [vmem:[#allocation6 + $0x8] sm:$0xff]
        %v354 = vld [vmem:[#allocation6 + $0x10] sm:$0xff]
        %v355 = vld [vmem:[#allocation6 + $0x18] sm:$0xff]
        %v356 = vld [vmem:[#allocation6 + $0x20] sm:$0xff]
        %v357 = vld [vmem:[#allocation6 + $0x28] sm:$0xff]
        %v358 = vld [vmem:[#allocation6 + $0x30] sm:$0xff]
        %v359 = vld [vmem:[#allocation6 + $0x38] sm:$0xff]
        %v360 = vld [vmem:[#allocation6 + $0x40] sm:$0xff]
        %v361 = vld [vmem:[#allocation6 + $0x48] sm:$0xff]
        %v362 = vld [vmem:[#allocation6 + $0x50] sm:$0xff]
        %v363 = vld [vmem:[#allocation6 + $0x58] sm:$0xff]
        %v364 = vld [vmem:[#allocation6 + $0x60] sm:$0xff]
        %v365 = vld [vmem:[#allocation6 + $0x68] sm:$0xff]
        %v366 = vld [vmem:[#allocation6 + $0x70] sm:$0xff]
        %v367 = vld [vmem:[#allocation6 + $0x78] sm:$0xff]
        %v368 = vld [vmem:[#allocation6 + $0x80] sm:$0xff]
        %v369 = vld [vmem:[#allocation6 + $0x88] sm:$0xff]
        %v370 = vld [vmem:[#allocation6 + $0x90] sm:$0xff]
        %v371 = vld [vmem:[#allocation6 + $0x98] sm:$0xff]
        %v372 = vld [vmem:[#allocation6 + $0xa0] sm:$0xff]
        %v373 = vld [vmem:[#allocation6 + $0xa8] sm:$0xff]
        %v374 = vld [vmem:[#allocation6 + $0xb0] sm:$0xff]
        %v375 = vld [vmem:[#allocation6 + $0xb8] sm:$0xff]
        %v376 = vld [vmem:[#allocation6 + $0xc0] sm:$0xff]
        %v377 = vld [vmem:[#allocation6 + $0xc8] sm:$0xff]
        %v378 = vld [vmem:[#allocation6 + $0xd0] sm:$0xff]
        %v379 = vld [vmem:[#allocation6 + $0xd8] sm:$0xff]
        %v380 = vld [vmem:[#allocation6 + $0xe0] sm:$0xff]
        %v381 = vld [vmem:[#allocation6 + $0xe8] sm:$0xff]
        %v382 = vld [vmem:[#allocation6 + $0xf0] sm:$0xff]
        %v383 = vld [vmem:[#allocation6 + $0xf8] sm:$0xff]
        %v384 = vld [vmem:[#allocation6 + $0x100] sm:$0xff]
        %v385 = vld [vmem:[#allocation6 + $0x108] sm:$0xff]
        %v386 = vld [vmem:[#allocation6 + $0x110] sm:$0xff]
        %v387 = vld [vmem:[#allocation6 + $0x118] sm:$0xff]
        %v388 = vld [vmem:[#allocation6 + $0x120] sm:$0xff]
        %v389 = vld [vmem:[#allocation6 + $0x128] sm:$0xff]
        %v390 = vld [vmem:[#allocation6 + $0x130] sm:$0xff]
        %v391 = vld [vmem:[#allocation6 + $0x138] sm:$0xff]
        %v392 = vld [vmem:[#allocation6 + $0x140] sm:$0xff]
        %v393 = vld [vmem:[#allocation6 + $0x148] sm:$0xff]
        %v394 = vld [vmem:[#allocation6 + $0x150] sm:$0xff]
        %v395 = vld [vmem:[#allocation6 + $0x158] sm:$0xff]
        %v396 = vld [vmem:[#allocation6 + $0x160] sm:$0xff]
        %v397 = vld [vmem:[#allocation6 + $0x168] sm:$0xff]
        %v398 = vld [vmem:[#allocation6 + $0x170] sm:$0xff]
        %v399 = vld [vmem:[#allocation6 + $0x178] sm:$0xff]
        %v400 = vld [vmem:[#allocation6 + $0x180] sm:$0xff]
        %v401 = vld [vmem:[#allocation6 + $0x188] sm:$0xff]
        %v402 = vld [vmem:[#allocation6 + $0x190] sm:$0xff]
        %v403 = vld [vmem:[#allocation6 + $0x198] sm:$0xff]
        %v404 = vld [vmem:[#allocation6 + $0x1a0] sm:$0xff]
        %v405 = vld [vmem:[#allocation6 + $0x1a8] sm:$0xff]
        %v406 = vld [vmem:[#allocation6 + $0x1b0] sm:$0xff]
        %v407 = vld [vmem:[#allocation6 + $0x1b8] sm:$0xff]
        %v408 = vld [vmem:[#allocation6 + $0x1c0] sm:$0xff]
        %v409 = vld [vmem:[#allocation6 + $0x1c8] sm:$0xff]
        %v410 = vld [vmem:[#allocation6 + $0x1d0] sm:$0xff]
        %v411 = vld [vmem:[#allocation6 + $0x1d8] sm:$0xff]
        %v412 = vld [vmem:[#allocation6 + $0x1e0] sm:$0xff]
        %v413 = vld [vmem:[#allocation6 + $0x1e8] sm:$0xff]
        %v414 = vld [vmem:[#allocation6 + $0x1f0] sm:$0xff]
        %v415 = vld [vmem:[#allocation6 + $0x1f8] sm:$0xff]
        %v416 = vld [vmem:[#allocation6 + $0x200] sm:$0xff]
        %v417 = vld [vmem:[#allocation6 + $0x208] sm:$0xff]
        %v418 = vld [vmem:[#allocation6 + $0x210] sm:$0xff]
        %v419 = vld [vmem:[#allocation6 + $0x218] sm:$0xff]
        %v420 = vld [vmem:[#allocation6 + $0x220] sm:$0xff]
        %v421 = vld [vmem:[#allocation6 + $0x228] sm:$0xff]
        %v422 = vld [vmem:[#allocation6 + $0x230] sm:$0xff]
        %v423 = vld [vmem:[#allocation6 + $0x238] sm:$0xff]
        %v424 = vld [vmem:[#allocation6 + $0x240] sm:$0xff]
        %v425 = vld [vmem:[#allocation6 + $0x248] sm:$0xff]
        %v426 = vld [vmem:[#allocation6 + $0x250] sm:$0xff]
        %v427 = vld [vmem:[#allocation6 + $0x258] sm:$0xff]
        %v428 = vld [vmem:[#allocation8] sm:$0xff]
        %v429 = vld [vmem:[#allocation8 + $0x8] sm:$0xff]
        %v430 = vld [vmem:[#allocation8 + $0x10] sm:$0xff]
        %v431 = vld [vmem:[#allocation8 + $0x18] sm:$0xff]
        %v432 = vld [vmem:[#allocation8 + $0x20] sm:$0xff]
        %v433 = vld [vmem:[#allocation8 + $0x28] sm:$0xff]
        %v434 = vld [vmem:[#allocation8 + $0x30] sm:$0xff]
        %v435 = vld [vmem:[#allocation8 + $0x38] sm:$0xff]
        %v436 = vld [vmem:[#allocation8 + $0x40] sm:$0xff]
        %v437 = vld [vmem:[#allocation8 + $0x48] sm:$0xff]
        %v438 = vld [vmem:[#allocation8 + $0x50] sm:$0xff]
        %v439 = vld [vmem:[#allocation8 + $0x58] sm:$0xff]
        %v440 = vld [vmem:[#allocation8 + $0x60] sm:$0xff]
        %v441 = vld [vmem:[#allocation8 + $0x68] sm:$0xff]
        %v442 = vld [vmem:[#allocation8 + $0x70] sm:$0xff]
        %v443 = vld [vmem:[#allocation8 + $0x78] sm:$0xff]
        %v444 = vld [vmem:[#allocation8 + $0x80] sm:$0xff]
        %v445 = vld [vmem:[#allocation8 + $0x88] sm:$0xff]
        %v446 = vld [vmem:[#allocation8 + $0x90] sm:$0xff]
        %v447 = vld [vmem:[#allocation8 + $0x98] sm:$0xff]
        %v448 = vld [vmem:[#allocation8 + $0xa0] sm:$0xff]
        %v449 = vld [vmem:[#allocation8 + $0xa8] sm:$0xff]
        %v450 = vld [vmem:[#allocation8 + $0xb0] sm:$0xff]
        %v451 = vld [vmem:[#allocation8 + $0xb8] sm:$0xff]
        %v452 = vld [vmem:[#allocation8 + $0xc0] sm:$0xff]
        %v453 = vld [vmem:[#allocation8 + $0xc8] sm:$0xff]
        %v454 = vld [vmem:[#allocation8 + $0xd0] sm:$0xff]
        %v455 = vld [vmem:[#allocation8 + $0xd8] sm:$0xff]
        %v456 = vld [vmem:[#allocation8 + $0xe0] sm:$0xff]
        %v457 = vld [vmem:[#allocation8 + $0xe8] sm:$0xff]
        %v458 = vld [vmem:[#allocation8 + $0xf0] sm:$0xff]
        %v459 = vld [vmem:[#allocation8 + $0xf8] sm:$0xff]
        %v460 = vld [vmem:[#allocation8 + $0x100] sm:$0xff]
        %v461 = vld [vmem:[#allocation8 + $0x108] sm:$0xff]
        %v462 = vld [vmem:[#allocation8 + $0x110] sm:$0xff]
        %v463 = vld [vmem:[#allocation8 + $0x118] sm:$0xff]
        %v464 = vld [vmem:[#allocation8 + $0x120] sm:$0xff]
        %v465 = vld [vmem:[#allocation8 + $0x128] sm:$0xff]
        %v466 = vld [vmem:[#allocation8 + $0x130] sm:$0xff]
        %v467 = vld [vmem:[#allocation8 + $0x138] sm:$0xff]
        %v468 = vld [vmem:[#allocation8 + $0x140] sm:$0xff]
        %v469 = vld [vmem:[#allocation8 + $0x148] sm:$0xff]
        %v470 = vld [vmem:[#allocation8 + $0x150] sm:$0xff]
        %v471 = vld [vmem:[#allocation8 + $0x158] sm:$0xff]
        %v472 = vld [vmem:[#allocation8 + $0x160] sm:$0xff]
        %v473 = vld [vmem:[#allocation8 + $0x168] sm:$0xff]
        %v474 = vld [vmem:[#allocation8 + $0x170] sm:$0xff]
        %v475 = vld [vmem:[#allocation8 + $0x178] sm:$0xff]
        %v476 = vld [vmem:[#allocation8 + $0x180] sm:$0xff]
        %v477 = vld [vmem:[#allocation8 + $0x188] sm:$0xff]
        %v478 = vld [vmem:[#allocation8 + $0x190] sm:$0xff]
        %v479 = vld [vmem:[#allocation8 + $0x198] sm:$0xff]
        %v480 = vld [vmem:[#allocation8 + $0x1a0] sm:$0xff]
        %v481 = vld [vmem:[#allocation8 + $0x1a8] sm:$0xff]
        %v482 = vld [vmem:[#allocation8 + $0x1b0] sm:$0xff]
        %v483 = vld [vmem:[#allocation8 + $0x1b8] sm:$0xff]
        %v484 = vld [vmem:[#allocation8 + $0x1c0] sm:$0xff]
        %v485 = vld [vmem:[#allocation8 + $0x1c8] sm:$0xff]
        %v486 = vld [vmem:[#allocation8 + $0x1d0] sm:$0xff]
        %v487 = vld [vmem:[#allocation8 + $0x1d8] sm:$0xff]
        %v488 = vld [vmem:[#allocation8 + $0x1e0] sm:$0xff]
        %v489 = vld [vmem:[#allocation8 + $0x1e8] sm:$0xff]
        %v490 = vld [vmem:[#allocation8 + $0x1f0] sm:$0xff]
        %v491 = vld [vmem:[#allocation8 + $0x1f8] sm:$0xff]
        %v492 = vld [vmem:[#allocation8 + $0x200] sm:$0xff]
        %v493 = vld [vmem:[#allocation8 + $0x208] sm:$0xff]
        %v494 = vld [vmem:[#allocation8 + $0x210] sm:$0xff]
        %v495 = vld [vmem:[#allocation8 + $0x218] sm:$0xff]
        %v496 = vld [vmem:[#allocation8 + $0x220] sm:$0xff]
        %v497 = vld [vmem:[#allocation8 + $0x228] sm:$0xff]
        %v498 = vld [vmem:[#allocation8 + $0x230] sm:$0xff]
        %v499 = vld [vmem:[#allocation8 + $0x238] sm:$0xff]
        %v500 = vld [vmem:[#allocation8 + $0x240] sm:$0xff]
        %v501 = vld [vmem:[#allocation8 + $0x248] sm:$0xff]
        %v502 = vld [vmem:[#allocation8 + $0x250] sm:$0xff]
        %v503 = vld [vmem:[#allocation8 + $0x258] sm:$0xff]
        %v580 = vunpack.c.l.b16 %v352
        %v581 = vunpack.c.h.b16 %v352
        %v582 = vunpack.c.l.b16 %v353
        %v583 = vunpack.c.h.b16 %v353
        %v584 = vunpack.c.l.b16 %v354
        %v585 = vunpack.c.h.b16 %v354
        %v586 = vunpack.c.l.b16 %v355
        %v587 = vunpack.c.h.b16 %v355
        %v588 = vunpack.c.l.b16 %v356
        %v589 = vunpack.c.h.b16 %v356
        %v590 = vunpack.c.l.b16 %v357
        %v591 = vunpack.c.h.b16 %v357
        %v592 = vunpack.c.l.b16 %v358
        %v593 = vunpack.c.h.b16 %v358
        %v594 = vunpack.c.l.b16 %v359
        %v595 = vunpack.c.h.b16 %v359
        %v596 = vunpack.c.l.b16 %v360
        %v597 = vunpack.c.h.b16 %v360
        %v598 = vunpack.c.l.b16 %v361
        %v599 = vunpack.c.h.b16 %v361
        %v600 = vunpack.c.l.b16 %v362
        %v601 = vunpack.c.h.b16 %v362
        %v602 = vunpack.c.l.b16 %v363
        %v603 = vunpack.c.h.b16 %v363
        %v604 = vunpack.c.l.b16 %v364
        %v605 = vunpack.c.h.b16 %v364
        %v606 = vunpack.c.l.b16 %v365
        %v607 = vunpack.c.h.b16 %v365
        %v608 = vunpack.c.l.b16 %v366
        %v609 = vunpack.c.h.b16 %v366
        %v610 = vunpack.c.l.b16 %v367
        %v611 = vunpack.c.h.b16 %v367
        %v612 = vunpack.c.l.b16 %v368
        %v613 = vunpack.c.h.b16 %v368
        %v614 = vunpack.c.l.b16 %v369
        %v615 = vunpack.c.h.b16 %v369
        %v616 = vunpack.c.l.b16 %v370
        %v617 = vunpack.c.h.b16 %v370
        %v618 = vunpack.c.l.b16 %v371
        %v619 = vunpack.c.h.b16 %v371
        %v620 = vunpack.c.l.b16 %v372
        %v621 = vunpack.c.h.b16 %v372
        %v622 = vunpack.c.l.b16 %v373
        %v623 = vunpack.c.h.b16 %v373
        %v624 = vunpack.c.l.b16 %v374
        %v625 = vunpack.c.h.b16 %v374
        %v626 = vunpack.c.l.b16 %v375
        %v627 = vunpack.c.h.b16 %v375
        %v628 = vunpack.c.l.b16 %v376
        %v629 = vunpack.c.h.b16 %v376
        %v630 = vunpack.c.l.b16 %v377
        %v631 = vunpack.c.h.b16 %v377
        %v632 = vunpack.c.l.b16 %v378
        %v633 = vunpack.c.h.b16 %v378
        %v634 = vunpack.c.l.b16 %v379
        %v635 = vunpack.c.h.b16 %v379
        %v636 = vunpack.c.l.b16 %v380
        %v637 = vunpack.c.h.b16 %v380
        %v638 = vunpack.c.l.b16 %v381
        %v639 = vunpack.c.h.b16 %v381
        %v640 = vunpack.c.l.b16 %v382
        %v641 = vunpack.c.h.b16 %v382
        %v642 = vunpack.c.l.b16 %v383
        %v643 = vunpack.c.h.b16 %v383
        %v644 = vunpack.c.l.b16 %v384
        %v645 = vunpack.c.h.b16 %v384
        %v646 = vunpack.c.l.b16 %v385
        %v647 = vunpack.c.h.b16 %v385
        %v648 = vunpack.c.l.b16 %v386
        %v649 = vunpack.c.h.b16 %v386
        %v650 = vunpack.c.l.b16 %v387
        %v651 = vunpack.c.h.b16 %v387
        %v652 = vunpack.c.l.b16 %v388
        %v653 = vunpack.c.h.b16 %v388
        %v654 = vunpack.c.l.b16 %v389
        %v655 = vunpack.c.h.b16 %v389
        %v656 = vunpack.c.l.b16 %v390
        %v657 = vunpack.c.h.b16 %v390
        %v658 = vunpack.c.l.b16 %v391
        %v659 = vunpack.c.h.b16 %v391
        %v660 = vunpack.c.l.b16 %v392
        %v661 = vunpack.c.h.b16 %v392
        %v662 = vunpack.c.l.b16 %v393
        %v663 = vunpack.c.h.b16 %v393
        %v664 = vunpack.c.l.b16 %v394
        %v665 = vunpack.c.h.b16 %v394
        %v666 = vunpack.c.l.b16 %v395
        %v667 = vunpack.c.h.b16 %v395
        %v668 = vunpack.c.l.b16 %v396
        %v669 = vunpack.c.h.b16 %v396
        %v670 = vunpack.c.l.b16 %v397
        %v671 = vunpack.c.h.b16 %v397
        %v672 = vunpack.c.l.b16 %v398
        %v673 = vunpack.c.h.b16 %v398
        %v674 = vunpack.c.l.b16 %v399
        %v675 = vunpack.c.h.b16 %v399
        %v676 = vunpack.c.l.b16 %v400
        %v677 = vunpack.c.h.b16 %v400
        %v678 = vunpack.c.l.b16 %v401
        %v679 = vunpack.c.h.b16 %v401
        %v680 = vunpack.c.l.b16 %v402
        %v681 = vunpack.c.h.b16 %v402
        %v682 = vunpack.c.l.b16 %v403
        %v683 = vunpack.c.h.b16 %v403
        %v684 = vunpack.c.l.b16 %v404
        %v685 = vunpack.c.h.b16 %v404
        %v686 = vunpack.c.l.b16 %v405
        %v687 = vunpack.c.h.b16 %v405
        %v688 = vunpack.c.l.b16 %v406
        %v689 = vunpack.c.h.b16 %v406
        %v690 = vunpack.c.l.b16 %v407
        %v691 = vunpack.c.h.b16 %v407
        %v692 = vunpack.c.l.b16 %v408
        %v693 = vunpack.c.h.b16 %v408
        %v694 = vunpack.c.l.b16 %v409
        %v695 = vunpack.c.h.b16 %v409
        %v696 = vunpack.c.l.b16 %v410
        %v697 = vunpack.c.h.b16 %v410
        %v698 = vunpack.c.l.b16 %v411
        %v699 = vunpack.c.h.b16 %v411
        %v700 = vunpack.c.l.b16 %v412
        %v701 = vunpack.c.h.b16 %v412
        %v702 = vunpack.c.l.b16 %v413
        %v703 = vunpack.c.h.b16 %v413
        %v704 = vunpack.c.l.b16 %v414
        %v705 = vunpack.c.h.b16 %v414
        %v706 = vunpack.c.l.b16 %v415
        %v707 = vunpack.c.h.b16 %v415
        %v708 = vunpack.c.l.b16 %v416
        %v709 = vunpack.c.h.b16 %v416
        %v710 = vunpack.c.l.b16 %v417
        %v711 = vunpack.c.h.b16 %v417
        %v712 = vunpack.c.l.b16 %v418
        %v713 = vunpack.c.h.b16 %v418
        %v714 = vunpack.c.l.b16 %v419
        %v715 = vunpack.c.h.b16 %v419
        %v716 = vunpack.c.l.b16 %v420
        %v717 = vunpack.c.h.b16 %v420
        %v718 = vunpack.c.l.b16 %v421
        %v719 = vunpack.c.h.b16 %v421
        %v720 = vunpack.c.l.b16 %v422
        %v721 = vunpack.c.h.b16 %v422
        %v722 = vunpack.c.l.b16 %v423
        %v723 = vunpack.c.h.b16 %v423
        %v724 = vunpack.c.l.b16 %v424
        %v725 = vunpack.c.h.b16 %v424
        %v726 = vunpack.c.l.b16 %v425
        %v727 = vunpack.c.h.b16 %v425
        %v728 = vunpack.c.l.b16 %v426
        %v729 = vunpack.c.h.b16 %v426
        %v730 = vunpack.c.l.b16 %v427
        %v731 = vunpack.c.h.b16 %v427
        %v732 = vpack.c.b16 %v582, %v580
        %v733 = vpack.c.b16 %v583, %v581
        %v734 = vpack.c.b16 %v586, %v584
        %v735 = vpack.c.b16 %v587, %v585
        %v736 = vpack.c.b16 %v590, %v588
        %v737 = vpack.c.b16 %v591, %v589
        %v738 = vpack.c.b16 %v594, %v592
        %v739 = vpack.c.b16 %v595, %v593
        %v740 = vpack.c.b16 %v598, %v596
        %v741 = vpack.c.b16 %v599, %v597
        %v742 = vpack.c.b16 %v602, %v600
        %v743 = vpack.c.b16 %v603, %v601
        %v744 = vpack.c.b16 %v606, %v604
        %v745 = vpack.c.b16 %v607, %v605
        %v746 = vpack.c.b16 %v610, %v608
        %v747 = vpack.c.b16 %v611, %v609
        %v748 = vpack.c.b16 %v614, %v612
        %v749 = vpack.c.b16 %v615, %v613
        %v750 = vpack.c.b16 %v618, %v616
        %v751 = vpack.c.b16 %v619, %v617
        %v752 = vpack.c.b16 %v622, %v620
        %v753 = vpack.c.b16 %v623, %v621
        %v754 = vpack.c.b16 %v626, %v624
        %v755 = vpack.c.b16 %v627, %v625
        %v756 = vpack.c.b16 %v630, %v628
        %v757 = vpack.c.b16 %v631, %v629
        %v758 = vpack.c.b16 %v634, %v632
        %v759 = vpack.c.b16 %v635, %v633
        %v760 = vpack.c.b16 %v638, %v636
        %v761 = vpack.c.b16 %v639, %v637
        %v762 = vpack.c.b16 %v642, %v640
        %v763 = vpack.c.b16 %v643, %v641
        %v764 = vpack.c.b16 %v646, %v644
        %v765 = vpack.c.b16 %v647, %v645
        %v766 = vpack.c.b16 %v650, %v648
        %v767 = vpack.c.b16 %v651, %v649
        %v768 = vpack.c.b16 %v654, %v652
        %v769 = vpack.c.b16 %v655, %v653
        %v770 = vpack.c.b16 %v658, %v656
        %v771 = vpack.c.b16 %v659, %v657
        %v772 = vpack.c.b16 %v662, %v660
        %v773 = vpack.c.b16 %v663, %v661
        %v774 = vpack.c.b16 %v666, %v664
        %v775 = vpack.c.b16 %v667, %v665
        %v776 = vpack.c.b16 %v670, %v668
        %v777 = vpack.c.b16 %v671, %v669
        %v778 = vpack.c.b16 %v674, %v672
        %v779 = vpack.c.b16 %v675, %v673
        %v780 = vpack.c.b16 %v678, %v676
        %v781 = vpack.c.b16 %v679, %v677
        %v782 = vpack.c.b16 %v682, %v680
        %v783 = vpack.c.b16 %v683, %v681
        %v784 = vpack.c.b16 %v686, %v684
        %v785 = vpack.c.b16 %v687, %v685
        %v786 = vpack.c.b16 %v690, %v688
        %v787 = vpack.c.b16 %v691, %v689
        %v788 = vpack.c.b16 %v694, %v692
        %v789 = vpack.c.b16 %v695, %v693
        %v790 = vpack.c.b16 %v698, %v696
        %v791 = vpack.c.b16 %v699, %v697
        %v792 = vpack.c.b16 %v702, %v700
        %v793 = vpack.c.b16 %v703, %v701
        %v794 = vpack.c.b16 %v706, %v704
        %v795 = vpack.c.b16 %v707, %v705
        %v796 = vpack.c.b16 %v710, %v708
        %v797 = vpack.c.b16 %v711, %v709
        %v798 = vpack.c.b16 %v714, %v712
        %v799 = vpack.c.b16 %v715, %v713
        %v800 = vpack.c.b16 %v718, %v716
        %v801 = vpack.c.b16 %v719, %v717
        %v802 = vpack.c.b16 %v722, %v720
        %v803 = vpack.c.b16 %v723, %v721
        %v804 = vpack.c.b16 %v726, %v724
        %v805 = vpack.c.b16 %v727, %v725
        %v806 = vpack.c.b16 %v730, %v728
        %v807 = vpack.c.b16 %v731, %v729
        %884 = vmatprep.subr.bf16.mxu0 0
        %885 = vmatpush1.bf16.msra.mxu0 %v336
        %886 = vmatprep.subr.bf16.mxu0 0
        %887 = vmatpush1.bf16.msra.mxu0 %v337
        %888 = vmatprep.subr.bf16.mxu0 0
        %889 = vmatpush1.bf16.msra.mxu0 %v338
        %890 = vmatprep.subr.bf16.mxu0 0
        %891 = vmatpush1.bf16.msra.mxu0 %v339
        %892 = vmatprep.subr.bf16.mxu0 0
        %893 = vmatpush1.bf16.msra.mxu0 %v340
        %894 = vmatprep.subr.bf16.mxu0 0
        %895 = vmatpush1.bf16.msra.mxu0 %v341
        %896 = vmatprep.subr.bf16.mxu0 0
        %897 = vmatpush1.bf16.msra.mxu0 %v342
        %898 = vmatprep.subr.bf16.mxu0 0
        %899 = vmatpush1.bf16.msra.mxu0 %v343
        %900 = vmatprep.subr.bf16.mxu0 0
        %901 = vmatpush1.bf16.msra.mxu0 %v344
        %902 = vmatprep.subr.bf16.mxu0 0
        %903 = vmatpush1.bf16.msra.mxu0 %v345
        %904 = vmatprep.subr.bf16.mxu0 0
        %905 = vmatpush1.bf16.msra.mxu0 %v346
        %906 = vmatprep.subr.bf16.mxu0 0
        %907 = vmatpush1.bf16.msra.mxu0 %v347
        %908 = vmatprep.subr.bf16.mxu0 0
        %909 = vmatpush1.bf16.msra.mxu0 %v348
        %910 = vmatprep.subr.bf16.mxu0 0
        %911 = vmatpush1.bf16.msra.mxu0 %v349
        %912 = vmatprep.subr.bf16.mxu0 0
        %913 = vmatpush1.bf16.msra.mxu0 %v350
        %914 = vmatprep.subr.bf16.mxu0 0
        %915 = vmatpush1.bf16.msra.mxu0 %v351
        %916 = vmatprep.mubr.bf16.mxu0 %v733
        %917 = vmatmul.mubr.bf16.gmra.mrb[0].mxu0 %v732
        %v918 = vpop.f32.mrb[0].mxu0
        %v919 = vadd.f32 %v428, %v918
        %v920 = vpop.f32.mrb[0].mxu0
        %v921 = vpop.f32.mrb[0].mxu0
        %v922 = vadd.f32 %v429, %v921
        %v923 = vpop.f32.mrb[0].mxu0
        %924 = vmatprep.mubr.bf16.mxu0 %v735
        %925 = vmatmul.mubr.bf16.gmra.mrb[0].mxu0 %v734
        %v926 = vpop.f32.mrb[0].mxu0
        %v927 = vadd.f32 %v430, %v926
        %v928 = vpop.f32.mrb[0].mxu0
        %v929 = vpop.f32.mrb[0].mxu0
        %v930 = vadd.f32 %v431, %v929
        %v931 = vpop.f32.mrb[0].mxu0
        %932 = vmatprep.mubr.bf16.mxu0 %v737
        %933 = vmatmul.mubr.bf16.gmra.mrb[0].mxu0 %v736
        %v934 = vpop.f32.mrb[0].mxu0
        %v935 = vadd.f32 %v432, %v934
        %v936 = vpop.f32.mrb[0].mxu0
        %v937 = vpop.f32.mrb[0].mxu0
        %v938 = vadd.f32 %v433, %v937
        %v939 = vpop.f32.mrb[0].mxu0
        %940 = vmatprep.mubr.bf16.mxu0 %v739
        %941 = vmatmul.mubr.bf16.gmra.mrb[0].mxu0 %v738
        %v942 = vpop.f32.mrb[0].mxu0
        %v943 = vadd.f32 %v434, %v942
        %v944 = vpop.f32.mrb[0].mxu0
        %v945 = vpop.f32.mrb[0].mxu0
        %v946 = vadd.f32 %v435, %v945
        %v947 = vpop.f32.mrb[0].mxu0
        %948 = vmatprep.mubr.bf16.mxu0 %v741
        %949 = vmatmul.mubr.bf16.gmra.mrb[0].mxu0 %v740
        %v950 = vpop.f32.mrb[0].mxu0
        %v951 = vadd.f32 %v436, %v950
        %v952 = vpop.f32.mrb[0].mxu0
        %v953 = vpop.f32.mrb[0].mxu0
        %v954 = vadd.f32 %v437, %v953
        %v955 = vpop.f32.mrb[0].mxu0
        %956 = vmatprep.mubr.bf16.mxu0 %v743
        %957 = vmatmul.mubr.bf16.gmra.mrb[0].mxu0 %v742
        %v958 = vpop.f32.mrb[0].mxu0
        %v959 = vadd.f32 %v438, %v958
        %v960 = vpop.f32.mrb[0].mxu0
        %v961 = vpop.f32.mrb[0].mxu0
        %v962 = vadd.f32 %v439, %v961
        %v963 = vpop.f32.mrb[0].mxu0
        %964 = vmatprep.mubr.bf16.mxu0 %v745
        %965 = vmatmul.mubr.bf16.gmra.mrb[0].mxu0 %v744
        %v966 = vpop.f32.mrb[0].mxu0
        %v967 = vadd.f32 %v440, %v966
        %v968 = vpop.f32.mrb[0].mxu0
        %v969 = vpop.f32.mrb[0].mxu0
        %v970 = vadd.f32 %v441, %v969
        %v971 = vpop.f32.mrb[0].mxu0
        %972 = vmatprep.mubr.bf16.mxu0 %v747
        %973 = vmatmul.mubr.bf16.gmra.mrb[0].mxu0 %v746
        %v974 = vpop.f32.mrb[0].mxu0
        %v975 = vadd.f32 %v442, %v974
        %v976 = vpop.f32.mrb[0].mxu0
        %v977 = vpop.f32.mrb[0].mxu0
        %v978 = vadd.f32 %v443, %v977
        %v979 = vpop.f32.mrb[0].mxu0
        %980 = vmatprep.mubr.bf16.mxu0 %v749
        %981 = vmatmul.mubr.bf16.gmra.mrb[0].mxu0 %v748
        %v982 = vpop.f32.mrb[0].mxu0
        %v983 = vadd.f32 %v444, %v982
        %v984 = vpop.f32.mrb[0].mxu0
        %v985 = vpop.f32.mrb[0].mxu0
        %v986 = vadd.f32 %v445, %v985
        %v987 = vpop.f32.mrb[0].mxu0
        %988 = vmatprep.mubr.bf16.mxu0 %v751
        %989 = vmatmul.mubr.bf16.gmra.mrb[0].mxu0 %v750
        %v990 = vpop.f32.mrb[0].mxu0
        %v991 = vadd.f32 %v446, %v990
        %v992 = vpop.f32.mrb[0].mxu0
        %v993 = vpop.f32.mrb[0].mxu0
        %v994 = vadd.f32 %v447, %v993
        %v995 = vpop.f32.mrb[0].mxu0
        %996 = vmatprep.mubr.bf16.mxu0 %v753
        %997 = vmatmul.mubr.bf16.gmra.mrb[0].mxu0 %v752
        %v998 = vpop.f32.mrb[0].mxu0
        %v999 = vadd.f32 %v448, %v998
        %v1000 = vpop.f32.mrb[0].mxu0
        %v1001 = vpop.f32.mrb[0].mxu0
        %v1002 = vadd.f32 %v449, %v1001
        %v1003 = vpop.f32.mrb[0].mxu0
        %1004 = vmatprep.mubr.bf16.mxu0 %v755
        %1005 = vmatmul.mubr.bf16.gmra.mrb[0].mxu0 %v754
        %v1006 = vpop.f32.mrb[0].mxu0
        %v1007 = vadd.f32 %v450, %v1006
        %v1008 = vpop.f32.mrb[0].mxu0
        %v1009 = vpop.f32.mrb[0].mxu0
        %v1010 = vadd.f32 %v451, %v1009
        %v1011 = vpop.f32.mrb[0].mxu0
        %1012 = vmatprep.mubr.bf16.mxu0 %v757
        %1013 = vmatmul.mubr.bf16.gmra.mrb[0].mxu0 %v756
        %v1014 = vpop.f32.mrb[0].mxu0
        %v1015 = vadd.f32 %v452, %v1014
        %v1016 = vpop.f32.mrb[0].mxu0
        %v1017 = vpop.f32.mrb[0].mxu0
        %v1018 = vadd.f32 %v453, %v1017
        %v1019 = vpop.f32.mrb[0].mxu0
        %1020 = vmatprep.mubr.bf16.mxu0 %v759
        %1021 = vmatmul.mubr.bf16.gmra.mrb[0].mxu0 %v758
        %v1022 = vpop.f32.mrb[0].mxu0
        %v1023 = vadd.f32 %v454, %v1022
        %v1024 = vpop.f32.mrb[0].mxu0
        %v1025 = vpop.f32.mrb[0].mxu0
        %v1026 = vadd.f32 %v455, %v1025
        %v1027 = vpop.f32.mrb[0].mxu0
        %1028 = vmatprep.mubr.bf16.mxu0 %v761
        %1029 = vmatmul.mubr.bf16.gmra.mrb[0].mxu0 %v760
        %v1030 = vpop.f32.mrb[0].mxu0
        %v1031 = vadd.f32 %v456, %v1030
        %v1032 = vpop.f32.mrb[0].mxu0
        %v1033 = vpop.f32.mrb[0].mxu0
        %v1034 = vadd.f32 %v457, %v1033
        %v1035 = vpop.f32.mrb[0].mxu0
        %1036 = vmatprep.mubr.bf16.mxu0 %v763
        %1037 = vmatmul.mubr.bf16.gmra.mrb[0].mxu0 %v762
        %v1038 = vpop.f32.mrb[0].mxu0
        %v1039 = vadd.f32 %v458, %v1038
        %v1040 = vpop.f32.mrb[0].mxu0
        %v1041 = vpop.f32.mrb[0].mxu0
        %v1042 = vadd.f32 %v459, %v1041
        %v1043 = vpop.f32.mrb[0].mxu0
        %1044 = vmatprep.mubr.bf16.mxu0 %v765
        %1045 = vmatmul.mubr.bf16.gmra.mrb[0].mxu0 %v764
        %v1046 = vpop.f32.mrb[0].mxu0
        %v1047 = vadd.f32 %v460, %v1046
        %v1048 = vpop.f32.mrb[0].mxu0
        %v1049 = vpop.f32.mrb[0].mxu0
        %v1050 = vadd.f32 %v461, %v1049
        %v1051 = vpop.f32.mrb[0].mxu0
        %1052 = vmatprep.mubr.bf16.mxu0 %v767
        %1053 = vmatmul.mubr.bf16.gmra.mrb[0].mxu0 %v766
        %v1054 = vpop.f32.mrb[0].mxu0
        %v1055 = vadd.f32 %v462, %v1054
        %v1056 = vpop.f32.mrb[0].mxu0
        %v1057 = vpop.f32.mrb[0].mxu0
        %v1058 = vadd.f32 %v463, %v1057
        %v1059 = vpop.f32.mrb[0].mxu0
        %1060 = vmatprep.mubr.bf16.mxu0 %v769
        %1061 = vmatmul.mubr.bf16.gmra.mrb[0].mxu0 %v768
        %v1062 = vpop.f32.mrb[0].mxu0
        %v1063 = vadd.f32 %v464, %v1062
        %v1064 = vpop.f32.mrb[0].mxu0
        %v1065 = vpop.f32.mrb[0].mxu0
        %v1066 = vadd.f32 %v465, %v1065
        %v1067 = vpop.f32.mrb[0].mxu0
        %1068 = vmatprep.mubr.bf16.mxu0 %v771
        %1069 = vmatmul.mubr.bf16.gmra.mrb[0].mxu0 %v770
        %v1070 = vpop.f32.mrb[0].mxu0
        %v1071 = vadd.f32 %v466, %v1070
        %v1072 = vpop.f32.mrb[0].mxu0
        %v1073 = vpop.f32.mrb[0].mxu0
        %v1074 = vadd.f32 %v467, %v1073
        %v1075 = vpop.f32.mrb[0].mxu0
        %1076 = vmatprep.mubr.bf16.mxu0 %v773
        %1077 = vmatmul.mubr.bf16.gmra.mrb[0].mxu0 %v772
        %v1078 = vpop.f32.mrb[0].mxu0
        %v1079 = vadd.f32 %v468, %v1078
        %v1080 = vpop.f32.mrb[0].mxu0
        %v1081 = vpop.f32.mrb[0].mxu0
        %v1082 = vadd.f32 %v469, %v1081
        %v1083 = vpop.f32.mrb[0].mxu0
        %1084 = vmatprep.mubr.bf16.mxu0 %v775
        %1085 = vmatmul.mubr.bf16.gmra.mrb[0].mxu0 %v774
        %v1086 = vpop.f32.mrb[0].mxu0
        %v1087 = vadd.f32 %v470, %v1086
        %v1088 = vpop.f32.mrb[0].mxu0
        %v1089 = vpop.f32.mrb[0].mxu0
        %v1090 = vadd.f32 %v471, %v1089
        %v1091 = vpop.f32.mrb[0].mxu0
        %1092 = vmatprep.mubr.bf16.mxu0 %v777
        %1093 = vmatmul.mubr.bf16.gmra.mrb[0].mxu0 %v776
        %v1094 = vpop.f32.mrb[0].mxu0
        %v1095 = vadd.f32 %v472, %v1094
        %v1096 = vpop.f32.mrb[0].mxu0
        %v1097 = vpop.f32.mrb[0].mxu0
        %v1098 = vadd.f32 %v473, %v1097
        %v1099 = vpop.f32.mrb[0].mxu0
        %1100 = vmatprep.mubr.bf16.mxu0 %v779
        %1101 = vmatmul.mubr.bf16.gmra.mrb[0].mxu0 %v778
        %v1102 = vpop.f32.mrb[0].mxu0
        %v1103 = vadd.f32 %v474, %v1102
        %v1104 = vpop.f32.mrb[0].mxu0
        %v1105 = vpop.f32.mrb[0].mxu0
        %v1106 = vadd.f32 %v475, %v1105
        %v1107 = vpop.f32.mrb[0].mxu0
        %1108 = vmatprep.mubr.bf16.mxu0 %v781
        %1109 = vmatmul.mubr.bf16.gmra.mrb[0].mxu0 %v780
        %v1110 = vpop.f32.mrb[0].mxu0
        %v1111 = vadd.f32 %v476, %v1110
        %v1112 = vpop.f32.mrb[0].mxu0
        %v1113 = vpop.f32.mrb[0].mxu0
        %v1114 = vadd.f32 %v477, %v1113
        %v1115 = vpop.f32.mrb[0].mxu0
        %1116 = vmatprep.mubr.bf16.mxu0 %v783
        %1117 = vmatmul.mubr.bf16.gmra.mrb[0].mxu0 %v782
        %v1118 = vpop.f32.mrb[0].mxu0
        %v1119 = vadd.f32 %v478, %v1118
        %v1120 = vpop.f32.mrb[0].mxu0
        %v1121 = vpop.f32.mrb[0].mxu0
        %v1122 = vadd.f32 %v479, %v1121
        %v1123 = vpop.f32.mrb[0].mxu0
        %1124 = vmatprep.mubr.bf16.mxu0 %v785
        %1125 = vmatmul.mubr.bf16.gmra.mrb[0].mxu0 %v784
        %v1126 = vpop.f32.mrb[0].mxu0
        %v1127 = vadd.f32 %v480, %v1126
        %v1128 = vpop.f32.mrb[0].mxu0
        %v1129 = vpop.f32.mrb[0].mxu0
        %v1130 = vadd.f32 %v481, %v1129
        %v1131 = vpop.f32.mrb[0].mxu0
        %1132 = vmatprep.mubr.bf16.mxu0 %v787
        %1133 = vmatmul.mubr.bf16.gmra.mrb[0].mxu0 %v786
        %v1134 = vpop.f32.mrb[0].mxu0
        %v1135 = vadd.f32 %v482, %v1134
        %v1136 = vpop.f32.mrb[0].mxu0
        %v1137 = vpop.f32.mrb[0].mxu0
        %v1138 = vadd.f32 %v483, %v1137
        %v1139 = vpop.f32.mrb[0].mxu0
        %1140 = vmatprep.mubr.bf16.mxu0 %v789
        %1141 = vmatmul.mubr.bf16.gmra.mrb[0].mxu0 %v788
        %v1142 = vpop.f32.mrb[0].mxu0
        %v1143 = vadd.f32 %v484, %v1142
        %v1144 = vpop.f32.mrb[0].mxu0
        %v1145 = vpop.f32.mrb[0].mxu0
        %v1146 = vadd.f32 %v485, %v1145
        %v1147 = vpop.f32.mrb[0].mxu0
        %1148 = vmatprep.mubr.bf16.mxu0 %v791
        %1149 = vmatmul.mubr.bf16.gmra.mrb[0].mxu0 %v790
        %v1150 = vpop.f32.mrb[0].mxu0
        %v1151 = vadd.f32 %v486, %v1150
        %v1152 = vpop.f32.mrb[0].mxu0
        %v1153 = vpop.f32.mrb[0].mxu0
        %v1154 = vadd.f32 %v487, %v1153
        %v1155 = vpop.f32.mrb[0].mxu0
        %1156 = vmatprep.mubr.bf16.mxu0 %v793
        %1157 = vmatmul.mubr.bf16.gmra.mrb[0].mxu0 %v792
        %v1158 = vpop.f32.mrb[0].mxu0
        %v1159 = vadd.f32 %v488, %v1158
        %v1160 = vpop.f32.mrb[0].mxu0
        %v1161 = vpop.f32.mrb[0].mxu0
        %v1162 = vadd.f32 %v489, %v1161
        %v1163 = vpop.f32.mrb[0].mxu0
        %1164 = vmatprep.mubr.bf16.mxu0 %v795
        %1165 = vmatmul.mubr.bf16.gmra.mrb[0].mxu0 %v794
        %v1166 = vpop.f32.mrb[0].mxu0
        %v1167 = vadd.f32 %v490, %v1166
        %v1168 = vpop.f32.mrb[0].mxu0
        %v1169 = vpop.f32.mrb[0].mxu0
        %v1170 = vadd.f32 %v491, %v1169
        %v1171 = vpop.f32.mrb[0].mxu0
        %1172 = vmatprep.mubr.bf16.mxu0 %v797
        %1173 = vmatmul.mubr.bf16.gmra.mrb[0].mxu0 %v796
        %v1174 = vpop.f32.mrb[0].mxu0
        %v1175 = vadd.f32 %v492, %v1174
        %v1176 = vpop.f32.mrb[0].mxu0
        %v1177 = vpop.f32.mrb[0].mxu0
        %v1178 = vadd.f32 %v493, %v1177
        %v1179 = vpop.f32.mrb[0].mxu0
        %1180 = vmatprep.mubr.bf16.mxu0 %v799
        %1181 = vmatmul.mubr.bf16.gmra.mrb[0].mxu0 %v798
        %v1182 = vpop.f32.mrb[0].mxu0
        %v1183 = vadd.f32 %v494, %v1182
        %v1184 = vpop.f32.mrb[0].mxu0
        %v1185 = vpop.f32.mrb[0].mxu0
        %v1186 = vadd.f32 %v495, %v1185
        %v1187 = vpop.f32.mrb[0].mxu0
        %1188 = vmatprep.mubr.bf16.mxu0 %v801
        %1189 = vmatmul.mubr.bf16.gmra.mrb[0].mxu0 %v800
        %v1190 = vpop.f32.mrb[0].mxu0
        %v1191 = vadd.f32 %v496, %v1190
        %v1192 = vpop.f32.mrb[0].mxu0
        %v1193 = vpop.f32.mrb[0].mxu0
        %v1194 = vadd.f32 %v497, %v1193
        %v1195 = vpop.f32.mrb[0].mxu0
        %1196 = vmatprep.mubr.bf16.mxu0 %v803
        %1197 = vmatmul.mubr.bf16.gmra.mrb[0].mxu0 %v802
        %v1198 = vpop.f32.mrb[0].mxu0
        %v1199 = vadd.f32 %v498, %v1198
        %v1200 = vpop.f32.mrb[0].mxu0
        %v1201 = vpop.f32.mrb[0].mxu0
        %v1202 = vadd.f32 %v499, %v1201
        %v1203 = vpop.f32.mrb[0].mxu0
        %1204 = vmatprep.mubr.bf16.mxu0 %v805
        %1205 = vmatmul.mubr.bf16.gmra.mrb[0].mxu0 %v804
        %v1206 = vpop.f32.mrb[0].mxu0
        %v1207 = vadd.f32 %v500, %v1206
        %v1208 = vpop.f32.mrb[0].mxu0
        %v1209 = vpop.f32.mrb[0].mxu0
        %v1210 = vadd.f32 %v501, %v1209
        %v1211 = vpop.f32.mrb[0].mxu0
        %1212 = vmatprep.mubr.bf16.mxu0 %v807
        %1213 = vmatmul.mubr.bf16.gmra.mrb[0].mxu0 %v806
        %v1214 = vpop.f32.mrb[0].mxu0
        %v1215 = vadd.f32 %v502, %v1214
        %v1216 = vpop.f32.mrb[0].mxu0
        %v1217 = vpop.f32.mrb[0].mxu0
        %v1218 = vadd.f32 %v503, %v1217
        %v1219 = vpop.f32.mrb[0].mxu0
        %1220 = vdwg.mxu0
        %v1221 = vxor.u32 %v919, 2147483648
        %v1222 = vxor.u32 %v922, 2147483648
        %v1223 = vxor.u32 %v927, 2147483648
        %v1224 = vxor.u32 %v930, 2147483648
        %v1225 = vxor.u32 %v935, 2147483648
        %v1226 = vxor.u32 %v938, 2147483648
        %v1227 = vxor.u32 %v943, 2147483648
        %v1228 = vxor.u32 %v946, 2147483648
        %v1229 = vxor.u32 %v951, 2147483648
        %v1230 = vxor.u32 %v954, 2147483648
        %v1231 = vxor.u32 %v959, 2147483648
        %v1232 = vxor.u32 %v962, 2147483648
        %v1233 = vxor.u32 %v967, 2147483648
        %v1234 = vxor.u32 %v970, 2147483648
        %v1235 = vxor.u32 %v975, 2147483648
        %v1236 = vxor.u32 %v978, 2147483648
        %v1237 = vxor.u32 %v983, 2147483648
        %v1238 = vxor.u32 %v986, 2147483648
        %v1239 = vxor.u32 %v991, 2147483648
        %v1240 = vxor.u32 %v994, 2147483648
        %v1241 = vxor.u32 %v999, 2147483648
        %v1242 = vxor.u32 %v1002, 2147483648
        %v1243 = vmul.f32 %v1221, 1.442695
        %v1244 = vpow.pop %v1243
        %v1245 = vmul.f32 %v1222, 1.442695
        %v1246 = vpow.pop %v1245
        %v1247 = vmul.f32 %v1223, 1.442695
        %v1248 = vpow.pop %v1247
        %v1249 = vmul.f32 %v1224, 1.442695
        %v1250 = vpow.pop %v1249
        %v1251 = vmul.f32 %v1225, 1.442695
        %v1252 = vpow.pop %v1251
        %v1253 = vmul.f32 %v1226, 1.442695
        %v1254 = vpow.pop %v1253
        %v1255 = vmul.f32 %v1227, 1.442695
        %v1256 = vpow.pop %v1255
        %v1257 = vmul.f32 %v1228, 1.442695
        %v1258 = vpow.pop %v1257
        %v1259 = vmul.f32 %v1229, 1.442695
        %v1260 = vpow.pop %v1259
        %v1261 = vmul.f32 %v1230, 1.442695
        %v1262 = vpow.pop %v1261
        %v1263 = vmul.f32 %v1231, 1.442695
        %v1264 = vpow.pop %v1263
        %v1265 = vmul.f32 %v1232, 1.442695
        %v1266 = vpow.pop %v1265
        %v1267 = vmul.f32 %v1233, 1.442695
        %v1268 = vpow.pop %v1267
        %v1269 = vmul.f32 %v1234, 1.442695
        %v1270 = vpow.pop %v1269
        %v1271 = vmul.f32 %v1235, 1.442695
        %v1272 = vpow.pop %v1271
        %v1273 = vmul.f32 %v1236, 1.442695
        %v1274 = vpow.pop %v1273
        %v1275 = vmul.f32 %v1237, 1.442695
        %v1276 = vpow.pop %v1275
        %v1277 = vmul.f32 %v1238, 1.442695
        %v1278 = vpow.pop %v1277
        %v1279 = vmul.f32 %v1239, 1.442695
        %v1280 = vpow.pop %v1279
        %v1281 = vmul.f32 %v1240, 1.442695
        %v1282 = vpow.pop %v1281
        %v1283 = vmul.f32 %v1241, 1.442695
        %v1284 = vpow.pop %v1283
        %v1285 = vmul.f32 %v1242, 1.442695
        %v1286 = vpow.pop %v1285
        %v1287 = vadd.f32 %v1244, 1.0
        %v1288 = vadd.f32 %v1246, 1.0
        %v1289 = vadd.f32 %v1248, 1.0
        %v1290 = vadd.f32 %v1250, 1.0
        %v1291 = vadd.f32 %v1252, 1.0
        %v1292 = vadd.f32 %v1254, 1.0
        %v1293 = vadd.f32 %v1256, 1.0
        %v1294 = vadd.f32 %v1258, 1.0
        %v1295 = vadd.f32 %v1260, 1.0
        %v1296 = vadd.f32 %v1262, 1.0
        %v1297 = vadd.f32 %v1264, 1.0
        %v1298 = vadd.f32 %v1266, 1.0
        %v1299 = vadd.f32 %v1268, 1.0
        %v1300 = vadd.f32 %v1270, 1.0
        %v1301 = vadd.f32 %v1272, 1.0
        %v1302 = vadd.f32 %v1274, 1.0
        %v1303 = vadd.f32 %v1276, 1.0
        %v1304 = vadd.f32 %v1278, 1.0
        %v1305 = vadd.f32 %v1280, 1.0
        %v1306 = vadd.f32 %v1282, 1.0
        %v1307 = vadd.f32 %v1284, 1.0
        %v1308 = vadd.f32 %v1286, 1.0
        %v1309 = vrcp.pop %v1287
        %v1310 = vmul.f32 1.0, %v1309
        %v1311 = vrcp.pop %v1288
        %v1312 = vmul.f32 1.0, %v1311
        %v1313 = vrcp.pop %v1289
        %v1314 = vmul.f32 1.0, %v1313
        %v1315 = vrcp.pop %v1290
        %v1316 = vmul.f32 1.0, %v1315
        %v1317 = vrcp.pop %v1291
        %v1318 = vmul.f32 1.0, %v1317
        %v1319 = vrcp.pop %v1292
        %v1320 = vmul.f32 1.0, %v1319
        %v1321 = vrcp.pop %v1293
        %v1322 = vmul.f32 1.0, %v1321
        %v1323 = vrcp.pop %v1294
        %v1324 = vmul.f32 1.0, %v1323
        %v1325 = vrcp.pop %v1295
        %v1326 = vmul.f32 1.0, %v1325
        %v1327 = vrcp.pop %v1296
        %v1328 = vmul.f32 1.0, %v1327
        %v1329 = vrcp.pop %v1297
        %v1330 = vmul.f32 1.0, %v1329
        %v1331 = vrcp.pop %v1298
        %v1332 = vmul.f32 1.0, %v1331
        %v1333 = vrcp.pop %v1299
        %v1334 = vmul.f32 1.0, %v1333
        %v1335 = vrcp.pop %v1300
        %v1336 = vmul.f32 1.0, %v1335
        %v1337 = vrcp.pop %v1301
        %v1338 = vmul.f32 1.0, %v1337
        %v1339 = vrcp.pop %v1302
        %v1340 = vmul.f32 1.0, %v1339
        %v1341 = vrcp.pop %v1303
        %v1342 = vmul.f32 1.0, %v1341
        %v1343 = vrcp.pop %v1304
        %v1344 = vmul.f32 1.0, %v1343
        %v1345 = vrcp.pop %v1305
        %v1346 = vmul.f32 1.0, %v1345
        %v1347 = vrcp.pop %v1306
        %v1348 = vmul.f32 1.0, %v1347
        %v1349 = vrcp.pop %v1307
        %v1350 = vmul.f32 1.0, %v1349
        %v1351 = vrcp.pop %v1308
        %v1352 = vmul.f32 1.0, %v1351
        %v1353 = vxor.u32 %v1007, 2147483648
        %v1354 = vxor.u32 %v1010, 2147483648
        %v1355 = vxor.u32 %v1015, 2147483648
        %v1356 = vxor.u32 %v1018, 2147483648
        %v1357 = vxor.u32 %v1023, 2147483648
        %v1358 = vxor.u32 %v1026, 2147483648
        %v1359 = vxor.u32 %v1031, 2147483648
        %v1360 = vxor.u32 %v1034, 2147483648
        %v1361 = vxor.u32 %v1039, 2147483648
        %v1362 = vxor.u32 %v1042, 2147483648
        %v1363 = vxor.u32 %v1047, 2147483648
        %v1364 = vxor.u32 %v1050, 2147483648
        %v1365 = vxor.u32 %v1055, 2147483648
        %v1366 = vxor.u32 %v1058, 2147483648
        %v1367 = vxor.u32 %v1063, 2147483648
        %v1368 = vxor.u32 %v1066, 2147483648
        %v1369 = vxor.u32 %v1071, 2147483648
        %v1370 = vxor.u32 %v1074, 2147483648
        %v1371 = vxor.u32 %v1079, 2147483648
        %v1372 = vxor.u32 %v1082, 2147483648
        %v1373 = vxor.u32 %v1087, 2147483648
        %v1374 = vxor.u32 %v1090, 2147483648
        %v1375 = vxor.u32 %v1095, 2147483648
        %v1376 = vxor.u32 %v1098, 2147483648
        %v1377 = vxor.u32 %v1103, 2147483648
        %v1378 = vxor.u32 %v1106, 2147483648
        %v1379 = vxor.u32 %v1111, 2147483648
        %v1380 = vxor.u32 %v1114, 2147483648
        %v1381 = vxor.u32 %v1119, 2147483648
        %v1382 = vxor.u32 %v1122, 2147483648
        %v1383 = vxor.u32 %v1127, 2147483648
        %v1384 = vxor.u32 %v1130, 2147483648
        %v1385 = vmul.f32 %v1353, 1.442695
        %v1386 = vpow.pop %v1385
        %v1387 = vmul.f32 %v1354, 1.442695
        %v1388 = vpow.pop %v1387
        %v1389 = vmul.f32 %v1355, 1.442695
        %v1390 = vpow.pop %v1389
        %v1391 = vmul.f32 %v1356, 1.442695
        %v1392 = vpow.pop %v1391
        %v1393 = vmul.f32 %v1357, 1.442695
        %v1394 = vpow.pop %v1393
        %v1395 = vmul.f32 %v1358, 1.442695
        %v1396 = vpow.pop %v1395
        %v1397 = vmul.f32 %v1359, 1.442695
        %v1398 = vpow.pop %v1397
        %v1399 = vmul.f32 %v1360, 1.442695
        %v1400 = vpow.pop %v1399
        %v1401 = vmul.f32 %v1361, 1.442695
        %v1402 = vpow.pop %v1401
        %v1403 = vmul.f32 %v1362, 1.442695
        %v1404 = vpow.pop %v1403
        %v1405 = vmul.f32 %v1363, 1.442695
        %v1406 = vpow.pop %v1405
        %v1407 = vmul.f32 %v1364, 1.442695
        %v1408 = vpow.pop %v1407
        %v1409 = vmul.f32 %v1365, 1.442695
        %v1410 = vpow.pop %v1409
        %v1411 = vmul.f32 %v1366, 1.442695
        %v1412 = vpow.pop %v1411
        %v1413 = vmul.f32 %v1367, 1.442695
        %v1414 = vpow.pop %v1413
        %v1415 = vmul.f32 %v1368, 1.442695
        %v1416 = vpow.pop %v1415
        %v1417 = vmul.f32 %v1369, 1.442695
        %v1418 = vpow.pop %v1417
        %v1419 = vmul.f32 %v1370, 1.442695
        %v1420 = vpow.pop %v1419
        %v1421 = vmul.f32 %v1371, 1.442695
        %v1422 = vpow.pop %v1421
        %v1423 = vmul.f32 %v1372, 1.442695
        %v1424 = vpow.pop %v1423
        %v1425 = vmul.f32 %v1373, 1.442695
        %v1426 = vpow.pop %v1425
        %v1427 = vmul.f32 %v1374, 1.442695
        %v1428 = vpow.pop %v1427
        %v1429 = vmul.f32 %v1375, 1.442695
        %v1430 = vpow.pop %v1429
        %v1431 = vmul.f32 %v1376, 1.442695
        %v1432 = vpow.pop %v1431
        %v1433 = vmul.f32 %v1377, 1.442695
        %v1434 = vpow.pop %v1433
        %v1435 = vmul.f32 %v1378, 1.442695
        %v1436 = vpow.pop %v1435
        %v1437 = vmul.f32 %v1379, 1.442695
        %v1438 = vpow.pop %v1437
        %v1439 = vmul.f32 %v1380, 1.442695
        %v1440 = vpow.pop %v1439
        %v1441 = vmul.f32 %v1381, 1.442695
        %v1442 = vpow.pop %v1441
        %v1443 = vmul.f32 %v1382, 1.442695
        %v1444 = vpow.pop %v1443
        %v1445 = vmul.f32 %v1383, 1.442695
        %v1446 = vpow.pop %v1445
        %v1447 = vmul.f32 %v1384, 1.442695
        %v1448 = vpow.pop %v1447
        %v1449 = vadd.f32 %v1386, 1.0
        %v1450 = vadd.f32 %v1388, 1.0
        %v1451 = vadd.f32 %v1390, 1.0
        %v1452 = vadd.f32 %v1392, 1.0
        %v1453 = vadd.f32 %v1394, 1.0
        %v1454 = vadd.f32 %v1396, 1.0
        %v1455 = vadd.f32 %v1398, 1.0
        %v1456 = vadd.f32 %v1400, 1.0
        %v1457 = vadd.f32 %v1402, 1.0
        %v1458 = vadd.f32 %v1404, 1.0
        %v1459 = vadd.f32 %v1406, 1.0
        %v1460 = vadd.f32 %v1408, 1.0
        %v1461 = vadd.f32 %v1410, 1.0
        %v1462 = vadd.f32 %v1412, 1.0
        %v1463 = vadd.f32 %v1414, 1.0
        %v1464 = vadd.f32 %v1416, 1.0
        %v1465 = vadd.f32 %v1418, 1.0
        %v1466 = vadd.f32 %v1420, 1.0
        %v1467 = vadd.f32 %v1422, 1.0
        %v1468 = vadd.f32 %v1424, 1.0
        %v1469 = vadd.f32 %v1426, 1.0
        %v1470 = vadd.f32 %v1428, 1.0
        %v1471 = vadd.f32 %v1430, 1.0
        %v1472 = vadd.f32 %v1432, 1.0
        %v1473 = vadd.f32 %v1434, 1.0
        %v1474 = vadd.f32 %v1436, 1.0
        %v1475 = vadd.f32 %v1438, 1.0
        %v1476 = vadd.f32 %v1440, 1.0
        %v1477 = vadd.f32 %v1442, 1.0
        %v1478 = vadd.f32 %v1444, 1.0
        %v1479 = vadd.f32 %v1446, 1.0
        %v1480 = vadd.f32 %v1448, 1.0
        %v1481 = vrcp.pop %v1449
        %v1482 = vmul.f32 1.0, %v1481
        %v1483 = vrcp.pop %v1450
        %v1484 = vmul.f32 1.0, %v1483
        %v1485 = vrcp.pop %v1451
        %v1486 = vmul.f32 1.0, %v1485
        %v1487 = vrcp.pop %v1452
        %v1488 = vmul.f32 1.0, %v1487
        %v1489 = vrcp.pop %v1453
        %v1490 = vmul.f32 1.0, %v1489
        %v1491 = vrcp.pop %v1454
        %v1492 = vmul.f32 1.0, %v1491
        %v1493 = vrcp.pop %v1455
        %v1494 = vmul.f32 1.0, %v1493
        %v1495 = vrcp.pop %v1456
        %v1496 = vmul.f32 1.0, %v1495
        %v1497 = vrcp.pop %v1457
        %v1498 = vmul.f32 1.0, %v1497
        %v1499 = vrcp.pop %v1458
        %v1500 = vmul.f32 1.0, %v1499
        %v1501 = vrcp.pop %v1459
        %v1502 = vmul.f32 1.0, %v1501
        %v1503 = vrcp.pop %v1460
        %v1504 = vmul.f32 1.0, %v1503
        %v1505 = vrcp.pop %v1461
        %v1506 = vmul.f32 1.0, %v1505
        %v1507 = vrcp.pop %v1462
        %v1508 = vmul.f32 1.0, %v1507
        %v1509 = vrcp.pop %v1463
        %v1510 = vmul.f32 1.0, %v1509
        %v1511 = vrcp.pop %v1464
        %v1512 = vmul.f32 1.0, %v1511
        %v1513 = vrcp.pop %v1465
        %v1514 = vmul.f32 1.0, %v1513
        %v1515 = vrcp.pop %v1466
        %v1516 = vmul.f32 1.0, %v1515
        %v1517 = vrcp.pop %v1467
        %v1518 = vmul.f32 1.0, %v1517
        %v1519 = vrcp.pop %v1468
        %v1520 = vmul.f32 1.0, %v1519
        %v1521 = vrcp.pop %v1469
        %v1522 = vmul.f32 1.0, %v1521
        %v1523 = vrcp.pop %v1470
        %v1524 = vmul.f32 1.0, %v1523
        %v1525 = vrcp.pop %v1471
        %v1526 = vmul.f32 1.0, %v1525
        %v1527 = vrcp.pop %v1472
        %v1528 = vmul.f32 1.0, %v1527
        %v1529 = vrcp.pop %v1473
        %v1530 = vmul.f32 1.0, %v1529
        %v1531 = vrcp.pop %v1474
        %v1532 = vmul.f32 1.0, %v1531
        %v1533 = vrcp.pop %v1475
        %v1534 = vmul.f32 1.0, %v1533
        %v1535 = vrcp.pop %v1476
        %v1536 = vmul.f32 1.0, %v1535
        %v1537 = vrcp.pop %v1477
        %v1538 = vmul.f32 1.0, %v1537
        %v1539 = vrcp.pop %v1478
        %v1540 = vmul.f32 1.0, %v1539
        %v1541 = vrcp.pop %v1479
        %v1542 = vmul.f32 1.0, %v1541
        %v1543 = vrcp.pop %v1480
        %v1544 = vmul.f32 1.0, %v1543
        %v1545 = vmul.f32 %v1482, %v304
        %v1546 = vmul.f32 %v1484, %v305
        %v1547 = vmul.f32 %v1486, %v306
        %v1548 = vmul.f32 %v1488, %v307
        %v1549 = vmul.f32 %v1490, %v308
        %v1550 = vmul.f32 %v1492, %v309
        %v1551 = vmul.f32 %v1494, %v310
        %v1552 = vmul.f32 %v1496, %v311
        %v1553 = vmul.f32 %v1498, %v312
        %v1554 = vmul.f32 %v1500, %v313
        %v1555 = vmul.f32 %v1502, %v314
        %v1556 = vmul.f32 %v1504, %v315
        %v1557 = vmul.f32 %v1506, %v316
        %v1558 = vmul.f32 %v1508, %v317
        %v1559 = vmul.f32 %v1510, %v318
        %v1560 = vmul.f32 %v1512, %v319
        %v1561 = vmul.f32 %v1514, %v320
        %v1562 = vmul.f32 %v1516, %v321
        %v1563 = vmul.f32 %v1518, %v322
        %v1564 = vmul.f32 %v1520, %v323
        %v1565 = vmul.f32 %v1522, %v324
        %v1566 = vmul.f32 %v1524, %v325
        %v1567 = vmul.f32 %v1526, %v326
        %v1568 = vmul.f32 %v1528, %v327
        %v1569 = vmul.f32 %v1530, %v328
        %v1570 = vmul.f32 %v1532, %v329
        %v1571 = vmul.f32 %v1534, %v330
        %v1572 = vmul.f32 %v1536, %v331
        %v1573 = vmul.f32 %v1538, %v332
        %v1574 = vmul.f32 %v1540, %v333
        %v1575 = vmul.f32 %v1542, %v334
        %v1576 = vmul.f32 %v1544, %v335
        %v1577 = vpack.c.bf16 %v1546, %v1545
        %v1578 = vpack.c.bf16 %v1548, %v1547
        %v1579 = vpack.c.bf16 %v1550, %v1549
        %v1580 = vpack.c.bf16 %v1552, %v1551
        %v1581 = vpack.c.bf16 %v1554, %v1553
        %v1582 = vpack.c.bf16 %v1556, %v1555
        %v1583 = vpack.c.bf16 %v1558, %v1557
        %v1584 = vpack.c.bf16 %v1560, %v1559
        %v1585 = vpack.c.bf16 %v1562, %v1561
        %v1586 = vpack.c.bf16 %v1564, %v1563
        %v1587 = vpack.c.bf16 %v1566, %v1565
        %v1588 = vpack.c.bf16 %v1568, %v1567
        %v1589 = vpack.c.bf16 %v1570, %v1569
        %v1590 = vpack.c.bf16 %v1572, %v1571
        %v1591 = vpack.c.bf16 %v1574, %v1573
        %v1592 = vpack.c.bf16 %v1576, %v1575
        %v1593 = vld [vmem:[#allocation9] sm:$0xff]
        %v1594 = vld [vmem:[#allocation9 + $0x8] sm:$0xff]
        %v1595 = vld [vmem:[#allocation9 + $0x10] sm:$0xff]
        %v1596 = vld [vmem:[#allocation9 + $0x18] sm:$0xff]
        %v1597 = vld [vmem:[#allocation9 + $0x20] sm:$0xff]
        %v1598 = vld [vmem:[#allocation9 + $0x28] sm:$0xff]
        %v1599 = vld [vmem:[#allocation9 + $0x30] sm:$0xff]
        %v1600 = vld [vmem:[#allocation9 + $0x38] sm:$0xff]
        %v1601 = vld [vmem:[#allocation9 + $0x40] sm:$0xff]
        %v1602 = vld [vmem:[#allocation9 + $0x48] sm:$0xff]
        %v1603 = vld [vmem:[#allocation9 + $0x50] sm:$0xff]
        %v1604 = vld [vmem:[#allocation9 + $0x58] sm:$0xff]
        %v1605 = vld [vmem:[#allocation9 + $0x60] sm:$0xff]
        %v1606 = vld [vmem:[#allocation9 + $0x68] sm:$0xff]
        %v1607 = vld [vmem:[#allocation9 + $0x70] sm:$0xff]
        %v1608 = vld [vmem:[#allocation9 + $0x78] sm:$0xff]
        %v1609 = vld [vmem:[#allocation9 + $0x80] sm:$0xff]
        %v1610 = vld [vmem:[#allocation9 + $0x88] sm:$0xff]
        %v1611 = vld [vmem:[#allocation9 + $0x90] sm:$0xff]
        %v1612 = vld [vmem:[#allocation9 + $0x98] sm:$0xff]
        %v1613 = vld [vmem:[#allocation9 + $0xa0] sm:$0xff]
        %v1614 = vld [vmem:[#allocation9 + $0xa8] sm:$0xff]
        %v1637 = vunpack.c.l.b16 %v1593
        %v1638 = vunpack.c.h.b16 %v1593
        %v1639 = vunpack.c.l.b16 %v1594
        %v1640 = vunpack.c.h.b16 %v1594
        %v1641 = vunpack.c.l.b16 %v1595
        %v1642 = vunpack.c.h.b16 %v1595
        %v1643 = vunpack.c.l.b16 %v1596
        %v1644 = vunpack.c.h.b16 %v1596
        %v1645 = vunpack.c.l.b16 %v1597
        %v1646 = vunpack.c.h.b16 %v1597
        %v1647 = vunpack.c.l.b16 %v1598
        %v1648 = vunpack.c.h.b16 %v1598
        %v1649 = vunpack.c.l.b16 %v1599
        %v1650 = vunpack.c.h.b16 %v1599
        %v1651 = vunpack.c.l.b16 %v1600
        %v1652 = vunpack.c.h.b16 %v1600
        %v1653 = vunpack.c.l.b16 %v1601
        %v1654 = vunpack.c.h.b16 %v1601
        %v1655 = vunpack.c.l.b16 %v1602
        %v1656 = vunpack.c.h.b16 %v1602
        %v1657 = vunpack.c.l.b16 %v1603
        %v1658 = vunpack.c.h.b16 %v1603
        %v1659 = vunpack.c.l.b16 %v1604
        %v1660 = vunpack.c.h.b16 %v1604
        %v1661 = vunpack.c.l.b16 %v1605
        %v1662 = vunpack.c.h.b16 %v1605
        %v1663 = vunpack.c.l.b16 %v1606
        %v1664 = vunpack.c.h.b16 %v1606
        %v1665 = vunpack.c.l.b16 %v1607
        %v1666 = vunpack.c.h.b16 %v1607
        %v1667 = vunpack.c.l.b16 %v1608
        %v1668 = vunpack.c.h.b16 %v1608
        %v1669 = vunpack.c.l.b16 %v1609
        %v1670 = vunpack.c.h.b16 %v1609
        %v1671 = vunpack.c.l.b16 %v1610
        %v1672 = vunpack.c.h.b16 %v1610
        %v1673 = vunpack.c.l.b16 %v1611
        %v1674 = vunpack.c.h.b16 %v1611
        %v1675 = vunpack.c.l.b16 %v1612
        %v1676 = vunpack.c.h.b16 %v1612
        %v1677 = vunpack.c.l.b16 %v1613
        %v1678 = vunpack.c.h.b16 %v1613
        %v1679 = vunpack.c.l.b16 %v1614
        %v1680 = vunpack.c.h.b16 %v1614
        %v1681 = vpack.c.b16 %v1639, %v1637
        %v1682 = vpack.c.b16 %v1640, %v1638
        %v1683 = vpack.c.b16 %v1643, %v1641
        %v1684 = vpack.c.b16 %v1644, %v1642
        %v1685 = vpack.c.b16 %v1647, %v1645
        %v1686 = vpack.c.b16 %v1648, %v1646
        %v1687 = vpack.c.b16 %v1651, %v1649
        %v1688 = vpack.c.b16 %v1652, %v1650
        %v1689 = vpack.c.b16 %v1655, %v1653
        %v1690 = vpack.c.b16 %v1656, %v1654
        %v1691 = vpack.c.b16 %v1659, %v1657
        %v1692 = vpack.c.b16 %v1660, %v1658
        %v1693 = vpack.c.b16 %v1663, %v1661
        %v1694 = vpack.c.b16 %v1664, %v1662
        %v1695 = vpack.c.b16 %v1667, %v1665
        %v1696 = vpack.c.b16 %v1668, %v1666
        %v1697 = vpack.c.b16 %v1671, %v1669
        %v1698 = vpack.c.b16 %v1672, %v1670
        %v1699 = vpack.c.b16 %v1675, %v1673
        %v1700 = vpack.c.b16 %v1676, %v1674
        %v1701 = vpack.c.b16 %v1679, %v1677
        %v1702 = vpack.c.b16 %v1680, %v1678
        %1725 = vmatprep.subr.bf16.mxu0 0
        %1726 = vmatpush1.bf16.msra.mxu0 %v1577
        %1727 = vmatprep.subr.bf16.mxu0 0
        %1728 = vmatpush1.bf16.msra.mxu0 %v1578
        %1729 = vmatprep.subr.bf16.mxu0 0
        %1730 = vmatpush1.bf16.msra.mxu0 %v1579
        %1731 = vmatprep.subr.bf16.mxu0 0
        %1732 = vmatpush1.bf16.msra.mxu0 %v1580
        %1733 = vmatprep.subr.bf16.mxu0 0
        %1734 = vmatpush1.bf16.msra.mxu0 %v1581
        %1735 = vmatprep.subr.bf16.mxu0 0
        %1736 = vmatpush1.bf16.msra.mxu0 %v1582
        %1737 = vmatprep.subr.bf16.mxu0 0
        %1738 = vmatpush1.bf16.msra.mxu0 %v1583
        %1739 = vmatprep.subr.bf16.mxu0 0
        %1740 = vmatpush1.bf16.msra.mxu0 %v1584
        %1741 = vmatprep.subr.bf16.mxu0 0
        %1742 = vmatpush1.bf16.msra.mxu0 %v1585
        %1743 = vmatprep.subr.bf16.mxu0 0
        %1744 = vmatpush1.bf16.msra.mxu0 %v1586
        %1745 = vmatprep.subr.bf16.mxu0 0
        %1746 = vmatpush1.bf16.msra.mxu0 %v1587
        %1747 = vmatprep.subr.bf16.mxu0 0
        %1748 = vmatpush1.bf16.msra.mxu0 %v1588
        %1749 = vmatprep.subr.bf16.mxu0 0
        %1750 = vmatpush1.bf16.msra.mxu0 %v1589
        %1751 = vmatprep.subr.bf16.mxu0 0
        %1752 = vmatpush1.bf16.msra.mxu0 %v1590
        %1753 = vmatprep.subr.bf16.mxu0 0
        %1754 = vmatpush1.bf16.msra.mxu0 %v1591
        %1755 = vmatprep.subr.bf16.mxu0 0
        %1756 = vmatpush1.bf16.msra.mxu0 %v1592
        %1757 = vmatprep.mubr.bf16.mxu0 %v1682
        %1758 = vmatmul.mubr.bf16.gmra.mrb[0].mxu0 %v1681
        %v1759 = vpop.f32.mrb[0].mxu0
        %v1760 = vadd.f32 0.0, %v1759
        %v1761 = vpop.f32.mrb[0].mxu0
        %v1762 = vpop.f32.mrb[0].mxu0
        %v1763 = vadd.f32 0.0, %v1762
        %v1764 = vpop.f32.mrb[0].mxu0
        %1765 = vmatprep.mubr.bf16.mxu0 %v1684
        %1766 = vmatmul.mubr.bf16.gmra.mrb[0].mxu0 %v1683
        %v1767 = vpop.f32.mrb[0].mxu0
        %v1768 = vadd.f32 0.0, %v1767
        %v1769 = vpop.f32.mrb[0].mxu0
        %v1770 = vpop.f32.mrb[0].mxu0
        %v1771 = vadd.f32 0.0, %v1770
        %v1772 = vpop.f32.mrb[0].mxu0
        %1773 = vmatprep.mubr.bf16.mxu0 %v1686
        %1774 = vmatmul.mubr.bf16.gmra.mrb[0].mxu0 %v1685
        %v1775 = vpop.f32.mrb[0].mxu0
        %v1776 = vadd.f32 0.0, %v1775
        %v1777 = vpop.f32.mrb[0].mxu0
        %v1778 = vpop.f32.mrb[0].mxu0
        %v1779 = vadd.f32 0.0, %v1778
        %v1780 = vpop.f32.mrb[0].mxu0
        %1781 = vmatprep.mubr.bf16.mxu0 %v1688
        %1782 = vmatmul.mubr.bf16.gmra.mrb[0].mxu0 %v1687
        %v1783 = vpop.f32.mrb[0].mxu0
        %v1784 = vadd.f32 0.0, %v1783
        %v1785 = vpop.f32.mrb[0].mxu0
        %v1786 = vpop.f32.mrb[0].mxu0
        %v1787 = vadd.f32 0.0, %v1786
        %v1788 = vpop.f32.mrb[0].mxu0
        %1789 = vmatprep.mubr.bf16.mxu0 %v1690
        %1790 = vmatmul.mubr.bf16.gmra.mrb[0].mxu0 %v1689
        %v1791 = vpop.f32.mrb[0].mxu0
        %v1792 = vadd.f32 0.0, %v1791
        %v1793 = vpop.f32.mrb[0].mxu0
        %v1794 = vpop.f32.mrb[0].mxu0
        %v1795 = vadd.f32 0.0, %v1794
        %v1796 = vpop.f32.mrb[0].mxu0
        %1797 = vmatprep.mubr.bf16.mxu0 %v1692
        %1798 = vmatmul.mubr.bf16.gmra.mrb[0].mxu0 %v1691
        %v1799 = vpop.f32.mrb[0].mxu0
        %v1800 = vadd.f32 0.0, %v1799
        %v1801 = vpop.f32.mrb[0].mxu0
        %v1802 = vpop.f32.mrb[0].mxu0
        %v1803 = vadd.f32 0.0, %v1802
        %v1804 = vpop.f32.mrb[0].mxu0
        %1805 = vmatprep.mubr.bf16.mxu0 %v1694
        %1806 = vmatmul.mubr.bf16.gmra.mrb[0].mxu0 %v1693
        %v1807 = vpop.f32.mrb[0].mxu0
        %v1808 = vadd.f32 0.0, %v1807
        %v1809 = vpop.f32.mrb[0].mxu0
        %v1810 = vpop.f32.mrb[0].mxu0
        %v1811 = vadd.f32 0.0, %v1810
        %v1812 = vpop.f32.mrb[0].mxu0
        %1813 = vmatprep.mubr.bf16.mxu0 %v1696
        %1814 = vmatmul.mubr.bf16.gmra.mrb[0].mxu0 %v1695
        %v1815 = vpop.f32.mrb[0].mxu0
        %v1816 = vadd.f32 0.0, %v1815
        %v1817 = vpop.f32.mrb[0].mxu0
        %v1818 = vpop.f32.mrb[0].mxu0
        %v1819 = vadd.f32 0.0, %v1818
        %v1820 = vpop.f32.mrb[0].mxu0
        %1821 = vmatprep.mubr.bf16.mxu0 %v1698
        %1822 = vmatmul.mubr.bf16.gmra.mrb[0].mxu0 %v1697
        %v1823 = vpop.f32.mrb[0].mxu0
        %v1824 = vadd.f32 0.0, %v1823
        %v1825 = vpop.f32.mrb[0].mxu0
        %v1826 = vpop.f32.mrb[0].mxu0
        %v1827 = vadd.f32 0.0, %v1826
        %v1828 = vpop.f32.mrb[0].mxu0
        %1829 = vmatprep.mubr.bf16.mxu0 %v1700
        %1830 = vmatmul.mubr.bf16.gmra.mrb[0].mxu0 %v1699
        %v1831 = vpop.f32.mrb[0].mxu0
        %v1832 = vadd.f32 0.0, %v1831
        %v1833 = vpop.f32.mrb[0].mxu0
        %v1834 = vpop.f32.mrb[0].mxu0
        %v1835 = vadd.f32 0.0, %v1834
        %v1836 = vpop.f32.mrb[0].mxu0
        %1837 = vmatprep.mubr.bf16.mxu0 %v1702
        %1838 = vmatmul.mubr.bf16.gmra.mrb[0].mxu0 %v1701
        %v1839 = vpop.f32.mrb[0].mxu0
        %v1840 = vadd.f32 0.0, %v1839
        %v1841 = vpop.f32.mrb[0].mxu0
        %v1842 = vpop.f32.mrb[0].mxu0
        %v1843 = vadd.f32 0.0, %v1842
        %v1844 = vpop.f32.mrb[0].mxu0
        %1845 = vdwg.mxu0
        %v1846 = vadd.f32 %v1135, %v1760
        %v1847 = vadd.f32 %v1138, %v1763
        %v1848 = vadd.f32 %v1143, %v1768
        %v1849 = vadd.f32 %v1146, %v1771
        %v1850 = vadd.f32 %v1151, %v1776
        %v1851 = vadd.f32 %v1154, %v1779
        %v1852 = vadd.f32 %v1159, %v1784
        %v1853 = vadd.f32 %v1162, %v1787
        %v1854 = vadd.f32 %v1167, %v1792
        %v1855 = vadd.f32 %v1170, %v1795
        %v1856 = vadd.f32 %v1175, %v1800
        %v1857 = vadd.f32 %v1178, %v1803
        %v1858 = vadd.f32 %v1183, %v1808
        %v1859 = vadd.f32 %v1186, %v1811
        %v1860 = vadd.f32 %v1191, %v1816
        %v1861 = vadd.f32 %v1194, %v1819
        %v1862 = vadd.f32 %v1199, %v1824
        %v1863 = vadd.f32 %v1202, %v1827
        %v1864 = vadd.f32 %v1207, %v1832
        %v1865 = vadd.f32 %v1210, %v1835
        %v1866 = vadd.f32 %v1215, %v1840
        %v1867 = vadd.f32 %v1218, %v1843
        %v1868 = vtanh.pop %v1846
        %v1869 = vtanh.pop %v1847
        %v1870 = vtanh.pop %v1848
        %v1871 = vtanh.pop %v1849
        %v1872 = vtanh.pop %v1850
        %v1873 = vtanh.pop %v1851
        %v1874 = vtanh.pop %v1852
        %v1875 = vtanh.pop %v1853
        %v1876 = vtanh.pop %v1854
        %v1877 = vtanh.pop %v1855
        %v1878 = vtanh.pop %v1856
        %v1879 = vtanh.pop %v1857
        %v1880 = vtanh.pop %v1858
        %v1881 = vtanh.pop %v1859
        %v1882 = vtanh.pop %v1860
        %v1883 = vtanh.pop %v1861
        %v1884 = vtanh.pop %v1862
        %v1885 = vtanh.pop %v1863
        %v1886 = vtanh.pop %v1864
        %v1887 = vtanh.pop %v1865
        %v1888 = vtanh.pop %v1866
        %v1889 = vtanh.pop %v1867
        %v1890 = vsub.f32 1.0, %v1310
        %v1891 = vsub.f32 1.0, %v1312
        %v1892 = vsub.f32 1.0, %v1314
        %v1893 = vsub.f32 1.0, %v1316
        %v1894 = vsub.f32 1.0, %v1318
        %v1895 = vsub.f32 1.0, %v1320
        %v1896 = vsub.f32 1.0, %v1322
        %v1897 = vsub.f32 1.0, %v1324
        %v1898 = vsub.f32 1.0, %v1326
        %v1899 = vsub.f32 1.0, %v1328
        %v1900 = vsub.f32 1.0, %v1330
        %v1901 = vsub.f32 1.0, %v1332
        %v1902 = vsub.f32 1.0, %v1334
        %v1903 = vsub.f32 1.0, %v1336
        %v1904 = vsub.f32 1.0, %v1338
        %v1905 = vsub.f32 1.0, %v1340
        %v1906 = vsub.f32 1.0, %v1342
        %v1907 = vsub.f32 1.0, %v1344
        %v1908 = vsub.f32 1.0, %v1346
        %v1909 = vsub.f32 1.0, %v1348
        %v1910 = vsub.f32 1.0, %v1350
        %v1911 = vsub.f32 1.0, %v1352
        %v1912 = vmul.f32 %v1890, %v304
        %v1913 = vmul.f32 %v1891, %v305
        %v1914 = vmul.f32 %v1892, %v306
        %v1915 = vmul.f32 %v1893, %v307
        %v1916 = vmul.f32 %v1894, %v308
        %v1917 = vmul.f32 %v1895, %v309
        %v1918 = vmul.f32 %v1896, %v310
        %v1919 = vmul.f32 %v1897, %v311
        %v1920 = vmul.f32 %v1898, %v312
        %v1921 = vmul.f32 %v1899, %v313
        %v1922 = vmul.f32 %v1900, %v314
        %v1923 = vmul.f32 %v1901, %v315
        %v1924 = vmul.f32 %v1902, %v316
        %v1925 = vmul.f32 %v1903, %v317
        %v1926 = vmul.f32 %v1904, %v318
        %v1927 = vmul.f32 %v1905, %v319
        %v1928 = vmul.f32 %v1906, %v320
        %v1929 = vmul.f32 %v1907, %v321
        %v1930 = vmul.f32 %v1908, %v322
        %v1931 = vmul.f32 %v1909, %v323
        %v1932 = vmul.f32 %v1910, %v324
        %v1933 = vmul.f32 %v1911, %v325
        %v1934 = vmul.f32 %v1310, %v1868
        %v1935 = vmul.f32 %v1312, %v1869
        %v1936 = vmul.f32 %v1314, %v1870
        %v1937 = vmul.f32 %v1316, %v1871
        %v1938 = vmul.f32 %v1318, %v1872
        %v1939 = vmul.f32 %v1320, %v1873
        %v1940 = vmul.f32 %v1322, %v1874
        %v1941 = vmul.f32 %v1324, %v1875
        %v1942 = vmul.f32 %v1326, %v1876
        %v1943 = vmul.f32 %v1328, %v1877
        %v1944 = vmul.f32 %v1330, %v1878
        %v1945 = vmul.f32 %v1332, %v1879
        %v1946 = vmul.f32 %v1334, %v1880
        %v1947 = vmul.f32 %v1336, %v1881
        %v1948 = vmul.f32 %v1338, %v1882
        %v1949 = vmul.f32 %v1340, %v1883
        %v1950 = vmul.f32 %v1342, %v1884
        %v1951 = vmul.f32 %v1344, %v1885
        %v1952 = vmul.f32 %v1346, %v1886
        %v1953 = vmul.f32 %v1348, %v1887
        %v1954 = vmul.f32 %v1350, %v1888
        %v1955 = vmul.f32 %v1352, %v1889
        %v1956 = vadd.f32 %v1912, %v1934
        %v1957 = vadd.f32 %v1913, %v1935
        %v1958 = vadd.f32 %v1914, %v1936
        %v1959 = vadd.f32 %v1915, %v1937
        %v1960 = vadd.f32 %v1916, %v1938
        %v1961 = vadd.f32 %v1917, %v1939
        %v1962 = vadd.f32 %v1918, %v1940
        %v1963 = vadd.f32 %v1919, %v1941
        %v1964 = vadd.f32 %v1920, %v1942
        %v1965 = vadd.f32 %v1921, %v1943
        %v1966 = vadd.f32 %v1922, %v1944
        %v1967 = vadd.f32 %v1923, %v1945
        %v1968 = vadd.f32 %v1924, %v1946
        %v1969 = vadd.f32 %v1925, %v1947
        %v1970 = vadd.f32 %v1926, %v1948
        %v1971 = vadd.f32 %v1927, %v1949
        %v1972 = vadd.f32 %v1928, %v1950
        %v1973 = vadd.f32 %v1929, %v1951
        %v1974 = vadd.f32 %v1930, %v1952
        %v1975 = vadd.f32 %v1931, %v1953
        %v1976 = vadd.f32 %v1932, %v1954
        %v1977 = vadd.f32 %v1933, %v1955
        %1978 = vst [vmem:[#allocation2] sm:$0xff] %v1956
        %1979 = vst [vmem:[#allocation2 + $0x8] sm:$0xff] %v1957
        %1980 = vst [vmem:[#allocation2 + $0x10] sm:$0xff] %v1958
        %1981 = vst [vmem:[#allocation2 + $0x18] sm:$0xff] %v1959
        %1982 = vst [vmem:[#allocation2 + $0x20] sm:$0xff] %v1960
        %1983 = vst [vmem:[#allocation2 + $0x28] sm:$0xff] %v1961
        %1984 = vst [vmem:[#allocation2 + $0x30] sm:$0xff] %v1962
        %1985 = vst [vmem:[#allocation2 + $0x38] sm:$0xff] %v1963
        %1986 = vst [vmem:[#allocation2 + $0x40] sm:$0xff] %v1964
        %1987 = vst [vmem:[#allocation2 + $0x48] sm:$0xff] %v1965
        %1988 = vst [vmem:[#allocation2 + $0x50] sm:$0xff] %v1966
        %1989 = vst [vmem:[#allocation2 + $0x58] sm:$0xff] %v1967
        %1990 = vst [vmem:[#allocation2 + $0x60] sm:$0xff] %v1968
        %1991 = vst [vmem:[#allocation2 + $0x68] sm:$0xff] %v1969
        %1992 = vst [vmem:[#allocation2 + $0x70] sm:$0xff] %v1970
        %1993 = vst [vmem:[#allocation2 + $0x78] sm:$0xff] %v1971
        %1994 = vst [vmem:[#allocation2 + $0x80] sm:$0xff] %v1972
        %1995 = vst [vmem:[#allocation2 + $0x88] sm:$0xff] %v1973
        %1996 = vst [vmem:[#allocation2 + $0x90] sm:$0xff] %v1974
        %1997 = vst [vmem:[#allocation2 + $0x98] sm:$0xff] %v1975
        %1998 = vst [vmem:[#allocation2 + $0xa0] sm:$0xff] %v1976
        %1999 = vst [vmem:[#allocation2 + $0xa8] sm:$0xff] %v1977
        %2000 = vst [vmem:[%s234] sm:$0xff] %v1956
        %2001 = vst [vmem:[%s234 + $0x8] sm:$0xff] %v1957
        %2002 = vst [vmem:[%s234 + $0x10] sm:$0xff] %v1958
        %2003 = vst [vmem:[%s234 + $0x18] sm:$0xff] %v1959
        %2004 = vst [vmem:[%s234 + $0x20] sm:$0xff] %v1960
        %2005 = vst [vmem:[%s234 + $0x28] sm:$0xff] %v1961
        %2006 = vst [vmem:[%s234 + $0x30] sm:$0xff] %v1962
        %2007 = vst [vmem:[%s234 + $0x38] sm:$0xff] %v1963
        %2008 = vst [vmem:[%s234 + $0x40] sm:$0xff] %v1964
        %2009 = vst [vmem:[%s234 + $0x48] sm:$0xff] %v1965
        %2010 = vst [vmem:[%s234 + $0x50] sm:$0xff] %v1966
        %2011 = vst [vmem:[%s234 + $0x58] sm:$0xff] %v1967
        %2012 = vst [vmem:[%s234 + $0x60] sm:$0xff] %v1968
        %2013 = vst [vmem:[%s234 + $0x68] sm:$0xff] %v1969
        %2014 = vst [vmem:[%s234 + $0x70] sm:$0xff] %v1970
        %2015 = vst [vmem:[%s234 + $0x78] sm:$0xff] %v1971
        %2016 = vst [vmem:[%s234 + $0x80] sm:$0xff] %v1972
        %2017 = vst [vmem:[%s234 + $0x88] sm:$0xff] %v1973
        %2018 = vst [vmem:[%s234 + $0x90] sm:$0xff] %v1974
        %2019 = vst [vmem:[%s234 + $0x98] sm:$0xff] %v1975
        %2020 = vst [vmem:[%s234 + $0xa0] sm:$0xff] %v1976
        %2021 = vst [vmem:[%s234 + $0xa8] sm:$0xff] %v1977
        %s2022 = sand.u32 %s113, 1
        %s2023 = scalar_lea.sflag [#allocation5], %s2022
        %s2024 = sand.u32 %s113, 1
        %s2025 = smul.addr %s2024, 176
        %s2026 = scalar_lea.vmem [#allocation11], %s2025
        // Predicated region
        $region57: #{tpu_custom_call.1} parent=35 // pred_check
          %p2027 = pneg %p123
        $region58: #{tpu_custom_call.1} parent=35 // pred_check_branch
          %2029 = sbr.rel (%p2027) target = $region60
        $region59: #{tpu_custom_call.1} parent=35 // pred_region
          %s2031 = ssub.s32 2816, 2816
          %2032 = vsyncadd %s2023, %s2031
          %s2033 = smul.addr %s21, 22
          %s2034 = smul.addr %s2033, 128
          %s2035 = scalar_lea.hbm %s4, %s2034
          %s2036 = sshll.u32 %s2026, 4
          %s2037 = int_to_ptr.vmem [resolvable:$true] %s2036
          %2042 = dma.vmem_to_hbm [thread:$0]  %s2037, 2816, %s2035, %s2023, 128, 128, 8
        $region60: #{tpu_custom_call.1} parent=35 // pred_fallthru
          _
      $region36: #{tpu_custom_call.1} parent=5 // pred_fallthru
        _
      %p2043 = scmp.le.s32.totalorder 2, %s16
      // Predicated region
      $region61: #{tpu_custom_call.1} parent=5 // pred_check
        %p2044 = pneg %p2043
      $region62: #{tpu_custom_call.1} parent=5 // pred_check_branch
        %2046 = sbr.rel (%p2044) target = $region64
      $region63: #{tpu_custom_call.1} parent=5 // pred_region
        %s2047 = ssub.s32 %s16, 2
        // Predicated region
        $region65: #{tpu_custom_call.1} parent=63 // pred_check
          %p2048 = pneg %p129
        $region66: #{tpu_custom_call.1} parent=63 // pred_check_branch
          %2050 = sbr.rel (%p2048) target = $region68
        $region67: #{tpu_custom_call.1} parent=63 // pred_region
          %s2051 = sand.u32 %s114, 1
          %s2052 = scalar_lea.sflag [#allocation5], %s2051
          %s2053 = sand.u32 %s114, 1
          %s2054 = smul.addr %s2053, 176
          %s2055 = scalar_lea.vmem [#allocation11], %s2054
          %2056 = dma.done %s2052, 2816
        $region68: #{tpu_custom_call.1} parent=63 // pred_fallthru
          _
      $region64: #{tpu_custom_call.1} parent=5 // pred_fallthru
        _
    $region6: #{tpu_custom_call.1} parent=1 // loop_footer
      %s20 = sadd.s32 1, %s16
    $region7: #{tpu_custom_call.1} parent=1 // loop_footer_branch
      %15 = sbr.rel target = $region3
    $region8: #{tpu_custom_call.1} parent=1 // loop_exit
      _
    %2057 = vsyncpa [#allocation4], 1
    %s2058 = scalar_lea.sflag [#allocation4], 1
    %2059 = vsyncpa %s2058, 1
    %2060 = vsyncpa [#allocation7], 1
    %2061 = vsyncpa [#allocation10], 1
    %2062 = vsyncpa [#allocation5], 1
    %s2063 = scalar_lea.sflag [#allocation5], 1
    %2064 = vsyncpa %s2063, 1

</llo_original>
